<compile_context>
chip_gen: v7x
topology: tpu7x:2x2x1
jax: 0.10.0
libtpu: 0.0.40
codegen_flags: <defaults>
</compile_context>

<pallas_src>
import jax
import jax.numpy as jnp
from jax.experimental import pallas as pl
from jax.experimental.pallas import tpu as pltpu

# ---------------- model config (small, consistent with the module) -------------
B = 2          # batch
T = 8          # sequence length
C = 32         # embedding_dim
N_HEADS = 4
HEAD_DIM = C // N_HEADS
LN_EPS = 1e-5
NEG_BIG = -1e30


def _decoder_block_kernel(
    x_ref,           # (B*T, C)
    bias_ref,        # (B*T, B*T) additive attention bias (0 / -1e30)
    wq_ref, wk_ref, wv_ref,      # (C, C) each, pre-transposed: y = x @ w
    wp_ref,                      # (H, D, C) pre-transposed, head-split output proj
    bp_ref,                      # (1, C)
    w1_ref, b1_ref,              # (C, 4C), (1, 4C)
    w2_ref, b2_ref,              # (4C, C), (1, C)
    g1_ref, be1_ref,             # (1, C) LayerNorm 1 gamma / beta
    g2_ref, be2_ref,             # (1, C) LayerNorm 2 gamma / beta
    out_ref,         # (B*T, C)
):
    x = x_ref[...].astype(jnp.float32)                       # (BT, C)
    scale = HEAD_DIM ** -0.5

    # ---------------- QKV projections (weights already transposed) ----------------
    q = jnp.dot(x, wq_ref[...], preferred_element_type=jnp.float32) * scale  # (BT, C)
    k = jnp.dot(x, wk_ref[...], preferred_element_type=jnp.float32)          # (BT, C)
    v = jnp.dot(x, wv_ref[...], preferred_element_type=jnp.float32)          # (BT, C)

    # ---------------- head-batched causal attention ----------------
    # Stack heads: (H, BT, D).  Static lane slices; no concat back needed later.
    qh = jnp.stack([q[:, h * HEAD_DIM:(h + 1) * HEAD_DIM] for h in range(N_HEADS)], axis=0)
    kh = jnp.stack([k[:, h * HEAD_DIM:(h + 1) * HEAD_DIM] for h in range(N_HEADS)], axis=0)
    vh = jnp.stack([v[:, h * HEAD_DIM:(h + 1) * HEAD_DIM] for h in range(N_HEADS)], axis=0)

    s = jnp.einsum('hqd,hkd->hqk', qh, kh,
                   preferred_element_type=jnp.float32)        # (H, BT, BT)
    s = s + bias_ref[...]                                     # causal + batch-block mask
    s = s - jnp.max(s, axis=-1, keepdims=True)
    p = jnp.exp(s)
    p = p * pl.reciprocal(jnp.sum(p, axis=-1, keepdims=True), approx=True)

    ctx = jnp.einsum('hqk,hkd->hqd', p, vh,
                     preferred_element_type=jnp.float32)      # (H, BT, D)

    # Output projection folded per head: sum_h ctx_h @ Wp_h  (removes the concat).
    attn = jnp.sum(jnp.einsum('hnd,hdc->hnc', ctx, wp_ref[...],
                              preferred_element_type=jnp.float32), axis=0)
    attn = attn + bp_ref[0]                                   # (BT, C)

    # ---------------- residual + LayerNorm 1 ----------------
    x1 = x + attn
    mu1 = jnp.mean(x1, axis=-1, keepdims=True)
    xc1 = x1 - mu1
    var1 = jnp.mean(xc1 * xc1, axis=-1, keepdims=True)
    x1n = xc1 * jax.lax.rsqrt(var1 + LN_EPS) * g1_ref[0] + be1_ref[0]

    # ---------------- FeedForward (Linear -> ReLU -> Linear) ----------------
    h1 = jnp.dot(x1n, w1_ref[...], preferred_element_type=jnp.float32) + b1_ref[0]   # (BT, 4C)
    h1 = jnp.maximum(h1, 0.0)
    ff = jnp.dot(h1, w2_ref[...], preferred_element_type=jnp.float32) + b2_ref[0]    # (BT, C)

    # ---------------- residual + LayerNorm 2 ----------------
    x2 = x1n + ff
    mu2 = jnp.mean(x2, axis=-1, keepdims=True)
    xc2 = x2 - mu2
    var2 = jnp.mean(xc2 * xc2, axis=-1, keepdims=True)
    out = xc2 * jax.lax.rsqrt(var2 + LN_EPS) * g2_ref[0] + be2_ref[0]

    out_ref[...] = out.astype(out_ref.dtype)


def gpt_decoder_block(x, params):
    """x: (B, T, C) float32.  params: dict of PyTorch-layout weights (see init_params)."""
    Bx, Tx, Cx = x.shape
    assert (Tx, Cx) == (T, C)
    BT = Bx * Tx

    x2d = x.reshape(BT, Cx)

    # Additive attention bias: causal within each batch row, -inf-like across batch rows.
    idx = jnp.arange(BT)
    bsel = idx // Tx
    pos = idx % Tx
    allowed = (bsel[:, None] == bsel[None, :]) & (pos[None, :] <= pos[:, None])
    attn_bias = jnp.where(allowed, 0.0, NEG_BIG).astype(jnp.float32)          # (BT, BT)

    # Pre-transpose / pre-split weights outside the kernel (free; would be done once
    # at parameter-load time in a real model).
    wq_t = params["wq"].T                                   # (C, C)
    wk_t = params["wk"].T
    wv_t = params["wv"].T
    wp_h = params["wp"].T.reshape(N_HEADS, HEAD_DIM, Cx)    # (H, D, C)
    w1_t = params["w1"].T                                   # (C, 4C)
    w2_t = params["w2"].T                                   # (4C, C)

    full = lambda shape: pl.BlockSpec(shape, lambda i, _s=shape: tuple(0 for _ in _s))

    in_specs = [
        full((BT, Cx)),                       # x
        full((BT, BT)),                       # attention bias
        full((Cx, Cx)), full((Cx, Cx)), full((Cx, Cx)),     # wq_t, wk_t, wv_t
        full((N_HEADS, HEAD_DIM, Cx)),        # wp_h
        full((1, Cx)),                        # bp
        full((Cx, 4 * Cx)), full((1, 4 * Cx)),   # w1_t, b1
        full((4 * Cx, Cx)), full((1, Cx)),       # w2_t, b2
        full((1, Cx)), full((1, Cx)),         # ln1 gamma, beta
        full((1, Cx)), full((1, Cx)),         # ln2 gamma, beta
    ]

    out2d = pl.pallas_call(
        _decoder_block_kernel,
        out_shape=jax.ShapeDtypeStruct((BT, Cx), x.dtype),
        grid_spec=pltpu.PrefetchScalarGridSpec(
            num_scalar_prefetch=0,
            grid=(1,),
            in_specs=in_specs,
            out_specs=full((BT, Cx)),
        ),
        compiler_params=pltpu.CompilerParams(
            dimension_semantics=("arbitrary",)),
    )(
        x2d, attn_bias,
        wq_t, wk_t, wv_t,
        wp_h, params["bp"],
        w1_t, params["b1"],
        w2_t, params["b2"],
        params["ln1_g"], params["ln1_b"],
        params["ln2_g"], params["ln2_b"],
    )
    return out2d.reshape(Bx, Tx, Cx)


# ---------------- pure-JAX reference (same math, for sanity check) ----------------
def reference(x, params):
    def ln(z, g, b):
        mu = jnp.mean(z, axis=-1, keepdims=True)
        var = jnp.mean((z - mu) ** 2, axis=-1, keepdims=True)
        return (z - mu) * jax.lax.rsqrt(var + LN_EPS) * g + b

    k = x @ params["wk"].T
    q = x @ params["wq"].T
    v = x @ params["wv"].T
    k = k.reshape(B, T, N_HEADS, HEAD_DIM).transpose(0, 2, 1, 3)
    q = q.reshape(B, T, N_HEADS, HEAD_DIM).transpose(0, 2, 1, 3)
    v = v.reshape(B, T, N_HEADS, HEAD_DIM).transpose(0, 2, 1, 3)
    s = jnp.einsum("bhqd,bhkd->bhqk", q, k) * (HEAD_DIM ** -0.5)
    causal = jnp.tril(jnp.ones((T, T), dtype=bool))
    s = jnp.where(causal, s, -jnp.inf)
    p = jax.nn.softmax(s, axis=-1)
    ctx = jnp.einsum("bhqk,bhkd->bhqd", p, v).transpose(0, 2, 1, 3).reshape(B, T, C)
    attn_out = ctx @ params["wp"].T + params["bp"][0]
    x1 = ln(x + attn_out, params["ln1_g"][0], params["ln1_b"][0])
    h1 = jnp.maximum(x1 @ params["w1"].T + params["b1"][0], 0.0)
    ff = h1 @ params["w2"].T + params["b2"][0]
    return ln(x1 + ff, params["ln2_g"][0], params["ln2_b"][0])


def init_params(key):
    keys = jax.random.split(key, 12)
    s = 0.05
    return {
        "wk": s * jax.random.normal(keys[0], (C, C), jnp.float32),
        "wq": s * jax.random.normal(keys[1], (C, C), jnp.float32),
        "wv": s * jax.random.normal(keys[2], (C, C), jnp.float32),
        "wp": s * jax.random.normal(keys[3], (C, C), jnp.float32),
        "bp": s * jax.random.normal(keys[4], (1, C), jnp.float32),
        "w1": s * jax.random.normal(keys[5], (4 * C, C), jnp.float32),
        "b1": s * jax.random.normal(keys[6], (1, 4 * C), jnp.float32),
        "w2": s * jax.random.normal(keys[7], (C, 4 * C), jnp.float32),
        "b2": s * jax.random.normal(keys[8], (1, C), jnp.float32),
        "ln1_g": jnp.ones((1, C), jnp.float32),
        "ln1_b": jnp.zeros((1, C), jnp.float32),
        "ln2_g": jnp.ones((1, C), jnp.float32),
        "ln2_b": jnp.zeros((1, C), jnp.float32),
    }


if __name__ == "__main__":
    key = jax.random.PRNGKey(0)
    kx, kp = jax.random.split(key)
    x = jax.random.normal(kx, (B, T, C), jnp.float32)
    params = init_params(kp)

    out = jax.block_until_ready(gpt_decoder_block(x, params))
    ref = jax.block_until_ready(reference(x, params))

    assert out.shape == (B, T, C)
    # Tolerance is loosened slightly because the kernel uses the approximate EUP
    # reciprocal for the softmax normalization (perf-review item); structural bugs
    # would produce O(1) errors and still fail this check.
    assert jnp.allclose(out, ref, rtol=2e-2, atol=2e-2), (
        "mismatch vs reference: max abs err = "
        f"{float(jnp.max(jnp.abs(out - ref)))}")
    print("KERNEL_OK")
</pallas_src>

<mosaic_0001>
module attributes {stable_mosaic.version = 11 : i64} {
  func.func @_decoder_block_kernel(%arg0: i32, %arg1: memref<16x32xf32, #tpu.memory_space<vmem>>, %arg2: memref<16x16xf32, #tpu.memory_space<vmem>>, %arg3: memref<32x32xf32, #tpu.memory_space<vmem>>, %arg4: memref<32x32xf32, #tpu.memory_space<vmem>>, %arg5: memref<32x32xf32, #tpu.memory_space<vmem>>, %arg6: memref<4x8x32xf32, #tpu.memory_space<vmem>>, %arg7: memref<1x32xf32, #tpu.memory_space<vmem>>, %arg8: memref<32x128xf32, #tpu.memory_space<vmem>>, %arg9: memref<1x128xf32, #tpu.memory_space<vmem>>, %arg10: memref<128x32xf32, #tpu.memory_space<vmem>>, %arg11: memref<1x32xf32, #tpu.memory_space<vmem>>, %arg12: memref<1x32xf32, #tpu.memory_space<vmem>>, %arg13: memref<1x32xf32, #tpu.memory_space<vmem>>, %arg14: memref<1x32xf32, #tpu.memory_space<vmem>>, %arg15: memref<1x32xf32, #tpu.memory_space<vmem>>, %arg16: memref<16x32xf32, #tpu.memory_space<vmem>>) attributes {dimension_semantics = [#tpu.dimension_semantics<arbitrary>], iteration_bounds = array<i64: 1>, scalar_prefetch = 0 : i64, scratch_operands = 0 : i64, tpu.core_type = #tpu.core_type<tc>, window_params = [{pipeline_mode = #tpu.pipeline_mode<synchronous>, transform_indices = @transform_0, window_bounds = array<i64: 16, 32>}, {pipeline_mode = #tpu.pipeline_mode<synchronous>, transform_indices = @transform_1, window_bounds = array<i64: 16, 16>}, {pipeline_mode = #tpu.pipeline_mode<synchronous>, transform_indices = @transform_2, window_bounds = array<i64: 32, 32>}, {pipeline_mode = #tpu.pipeline_mode<synchronous>, transform_indices = @transform_3, window_bounds = array<i64: 32, 32>}, {pipeline_mode = #tpu.pipeline_mode<synchronous>, transform_indices = @transform_4, window_bounds = array<i64: 32, 32>}, {pipeline_mode = #tpu.pipeline_mode<synchronous>, transform_indices = @transform_5, window_bounds = array<i64: 4, 8, 32>}, {pipeline_mode = #tpu.pipeline_mode<synchronous>, transform_indices = @transform_6, window_bounds = array<i64: 1, 32>}, {pipeline_mode = #tpu.pipeline_mode<synchronous>, transform_indices = @transform_7, window_bounds = array<i64: 32, 128>}, {pipeline_mode = #tpu.pipeline_mode<synchronous>, transform_indices = @transform_8, window_bounds = array<i64: 1, 128>}, {pipeline_mode = #tpu.pipeline_mode<synchronous>, transform_indices = @transform_9, window_bounds = array<i64: 128, 32>}, {pipeline_mode = #tpu.pipeline_mode<synchronous>, transform_indices = @transform_10, window_bounds = array<i64: 1, 32>}, {pipeline_mode = #tpu.pipeline_mode<synchronous>, transform_indices = @transform_11, window_bounds = array<i64: 1, 32>}, {pipeline_mode = #tpu.pipeline_mode<synchronous>, transform_indices = @transform_12, window_bounds = array<i64: 1, 32>}, {pipeline_mode = #tpu.pipeline_mode<synchronous>, transform_indices = @transform_13, window_bounds = array<i64: 1, 32>}, {pipeline_mode = #tpu.pipeline_mode<synchronous>, transform_indices = @transform_14, window_bounds = array<i64: 1, 32>}, {pipeline_mode = #tpu.pipeline_mode<synchronous>, transform_indices = @transform_15, window_bounds = array<i64: 16, 32>}]} {
    %c0 = arith.constant 0 : index
    %c0_0 = arith.constant 0 : index
    %0 = vector.load %arg1[%c0, %c0_0] : memref<16x32xf32, #tpu.memory_space<vmem>>, vector<16x32xf32>
    %c0_1 = arith.constant 0 : index
    %c0_2 = arith.constant 0 : index
    %1 = vector.load %arg3[%c0_1, %c0_2] : memref<32x32xf32, #tpu.memory_space<vmem>>, vector<32x32xf32>
    %cst = arith.constant dense<0.000000e+00> : vector<16x32xf32>
    %2 = tpu.matmul %0, %1, %cst {dimension_numbers = #tpu.dot_dimension_numbers<[1], [0], [0], [1], [0, 0, 1, 1], [], []>} : vector<16x32xf32>, vector<32x32xf32>, vector<16x32xf32> -> vector<16x32xf32>
    %cst_3 = arith.constant 0.353553385 : f32
    %3 = vector.broadcast %cst_3 : f32 to vector<16x32xf32>
    %4 = arith.mulf %2, %3 : vector<16x32xf32>
    %c0_4 = arith.constant 0 : index
    %c0_5 = arith.constant 0 : index
    %5 = vector.load %arg4[%c0_4, %c0_5] : memref<32x32xf32, #tpu.memory_space<vmem>>, vector<32x32xf32>
    %cst_6 = arith.constant dense<0.000000e+00> : vector<16x32xf32>
    %6 = tpu.matmul %0, %5, %cst_6 {dimension_numbers = #tpu.dot_dimension_numbers<[1], [0], [0], [1], [0, 0, 1, 1], [], []>} : vector<16x32xf32>, vector<32x32xf32>, vector<16x32xf32> -> vector<16x32xf32>
    %c0_7 = arith.constant 0 : index
    %c0_8 = arith.constant 0 : index
    %7 = vector.load %arg5[%c0_7, %c0_8] : memref<32x32xf32, #tpu.memory_space<vmem>>, vector<32x32xf32>
    %cst_9 = arith.constant dense<0.000000e+00> : vector<16x32xf32>
    %8 = tpu.matmul %0, %7, %cst_9 {dimension_numbers = #tpu.dot_dimension_numbers<[1], [0], [0], [1], [0, 0, 1, 1], [], []>} : vector<16x32xf32>, vector<32x32xf32>, vector<16x32xf32> -> vector<16x32xf32>
    %9 = vector.extract_strided_slice %4 {offsets = [0, 0], sizes = [16, 8], strides = [1, 1]} : vector<16x32xf32> to vector<16x8xf32>
    %10 = vector.extract_strided_slice %4 {offsets = [0, 8], sizes = [16, 8], strides = [1, 1]} : vector<16x32xf32> to vector<16x8xf32>
    %11 = vector.extract_strided_slice %4 {offsets = [0, 16], sizes = [16, 8], strides = [1, 1]} : vector<16x32xf32> to vector<16x8xf32>
    %12 = vector.extract_strided_slice %4 {offsets = [0, 24], sizes = [16, 8], strides = [1, 1]} : vector<16x32xf32> to vector<16x8xf32>
    %13 = vector.shape_cast %9 : vector<16x8xf32> to vector<1x16x8xf32>
    %14 = vector.shape_cast %10 : vector<16x8xf32> to vector<1x16x8xf32>
    %15 = vector.shape_cast %11 : vector<16x8xf32> to vector<1x16x8xf32>
    %16 = vector.shape_cast %12 : vector<16x8xf32> to vector<1x16x8xf32>
    %17 = tpu.concatenate %13, %14, %15, %16 in 0 : vector<1x16x8xf32>, vector<1x16x8xf32>, vector<1x16x8xf32>, vector<1x16x8xf32> -> vector<4x16x8xf32>
    %18 = vector.extract_strided_slice %6 {offsets = [0, 0], sizes = [16, 8], strides = [1, 1]} : vector<16x32xf32> to vector<16x8xf32>
    %19 = vector.extract_strided_slice %6 {offsets = [0, 8], sizes = [16, 8], strides = [1, 1]} : vector<16x32xf32> to vector<16x8xf32>
    %20 = vector.extract_strided_slice %6 {offsets = [0, 16], sizes = [16, 8], strides = [1, 1]} : vector<16x32xf32> to vector<16x8xf32>
    %21 = vector.extract_strided_slice %6 {offsets = [0, 24], sizes = [16, 8], strides = [1, 1]} : vector<16x32xf32> to vector<16x8xf32>
    %22 = vector.shape_cast %18 : vector<16x8xf32> to vector<1x16x8xf32>
    %23 = vector.shape_cast %19 : vector<16x8xf32> to vector<1x16x8xf32>
    %24 = vector.shape_cast %20 : vector<16x8xf32> to vector<1x16x8xf32>
    %25 = vector.shape_cast %21 : vector<16x8xf32> to vector<1x16x8xf32>
    %26 = tpu.concatenate %22, %23, %24, %25 in 0 : vector<1x16x8xf32>, vector<1x16x8xf32>, vector<1x16x8xf32>, vector<1x16x8xf32> -> vector<4x16x8xf32>
    %27 = vector.extract_strided_slice %8 {offsets = [0, 0], sizes = [16, 8], strides = [1, 1]} : vector<16x32xf32> to vector<16x8xf32>
    %28 = vector.extract_strided_slice %8 {offsets = [0, 8], sizes = [16, 8], strides = [1, 1]} : vector<16x32xf32> to vector<16x8xf32>
    %29 = vector.extract_strided_slice %8 {offsets = [0, 16], sizes = [16, 8], strides = [1, 1]} : vector<16x32xf32> to vector<16x8xf32>
    %30 = vector.extract_strided_slice %8 {offsets = [0, 24], sizes = [16, 8], strides = [1, 1]} : vector<16x32xf32> to vector<16x8xf32>
    %31 = vector.shape_cast %27 : vector<16x8xf32> to vector<1x16x8xf32>
    %32 = vector.shape_cast %28 : vector<16x8xf32> to vector<1x16x8xf32>
    %33 = vector.shape_cast %29 : vector<16x8xf32> to vector<1x16x8xf32>
    %34 = vector.shape_cast %30 : vector<16x8xf32> to vector<1x16x8xf32>
    %35 = tpu.concatenate %31, %32, %33, %34 in 0 : vector<1x16x8xf32>, vector<1x16x8xf32>, vector<1x16x8xf32>, vector<1x16x8xf32> -> vector<4x16x8xf32>
    "tpu.trace_start"() <{level = 10 : i32, message = "hqd,hkd->hqk"}> : () -> ()
    %cst_10 = arith.constant dense<0.000000e+00> : vector<4x16x16xf32>
    %36 = tpu.matmul %17, %26, %cst_10 {dimension_numbers = #tpu.dot_dimension_numbers<[2], [2], [1], [1], [0, 0, 0, 1, 1, 1], [0], [0]>} : vector<4x16x8xf32>, vector<4x16x8xf32>, vector<4x16x16xf32> -> vector<4x16x16xf32>
    "tpu.trace_stop"() : () -> ()
    %c0_11 = arith.constant 0 : index
    %c0_12 = arith.constant 0 : index
    %37 = vector.load %arg2[%c0_11, %c0_12] : memref<16x16xf32, #tpu.memory_space<vmem>>, vector<16x16xf32>
    %38 = vector.shape_cast %37 : vector<16x16xf32> to vector<1x16x16xf32>
    %39 = vector.broadcast %38 : vector<1x16x16xf32> to vector<4x16x16xf32>
    %40 = arith.addf %36, %39 : vector<4x16x16xf32>
    %cst_13 = arith.constant dense<0xFF800000> : vector<4x16xf32>
    %41 = vector.multi_reduction <maximumf>, %40, %cst_13 [2] : vector<4x16x16xf32> to vector<4x16xf32>
    %42 = vector.shape_cast %41 : vector<4x16xf32> to vector<4x16x1xf32>
    %43 = vector.broadcast %42 : vector<4x16x1xf32> to vector<4x16x16xf32>
    %44 = arith.subf %40, %43 : vector<4x16x16xf32>
    %45 = math.exp %44 : vector<4x16x16xf32>
    %cst_14 = arith.constant dense<0.000000e+00> : vector<4x16xf32>
    %46 = vector.multi_reduction <add>, %45, %cst_14 [2] : vector<4x16x16xf32> to vector<4x16xf32>
    %47 = vector.shape_cast %46 : vector<4x16xf32> to vector<4x16x1xf32>
    %48 = tpu.reciprocal %47 {approx = true} : vector<4x16x1xf32> -> vector<4x16x1xf32>
    %49 = vector.broadcast %48 : vector<4x16x1xf32> to vector<4x16x16xf32>
    %50 = arith.mulf %45, %49 : vector<4x16x16xf32>
    "tpu.trace_start"() <{level = 10 : i32, message = "hqk,hkd->hqd"}> : () -> ()
    %cst_15 = arith.constant dense<0.000000e+00> : vector<4x16x8xf32>
    %51 = tpu.matmul %50, %35, %cst_15 {dimension_numbers = #tpu.dot_dimension_numbers<[2], [1], [1], [2], [0, 0, 0, 1, 1, 2], [0], [0]>} : vector<4x16x16xf32>, vector<4x16x8xf32>, vector<4x16x8xf32> -> vector<4x16x8xf32>
    "tpu.trace_stop"() : () -> ()
    %c0_16 = arith.constant 0 : index
    %c0_17 = arith.constant 0 : index
    %c0_18 = arith.constant 0 : index
    %52 = vector.load %arg6[%c0_16, %c0_17, %c0_18] : memref<4x8x32xf32, #tpu.memory_space<vmem>>, vector<4x8x32xf32>
    "tpu.trace_start"() <{level = 10 : i32, message = "hnd,hdc->hnc"}> : () -> ()
    %cst_19 = arith.constant dense<0.000000e+00> : vector<4x16x32xf32>
    %53 = tpu.matmul %51, %52, %cst_19 {dimension_numbers = #tpu.dot_dimension_numbers<[2], [1], [1], [2], [0, 0, 0, 1, 1, 2], [0], [0]>} : vector<4x16x8xf32>, vector<4x8x32xf32>, vector<4x16x32xf32> -> vector<4x16x32xf32>
    "tpu.trace_stop"() : () -> ()
    %cst_20 = arith.constant dense<0.000000e+00> : vector<16x32xf32>
    %54 = vector.multi_reduction <add>, %53, %cst_20 [0] : vector<4x16x32xf32> to vector<16x32xf32>
    %c0_21 = arith.constant 0 : index
    %c0_22 = arith.constant 0 : index
    %55 = vector.load %arg7[%c0_21, %c0_22] : memref<1x32xf32, #tpu.memory_space<vmem>>, vector<1x32xf32>
    %56 = vector.shape_cast %55 : vector<1x32xf32> to vector<32xf32>
    %57 = vector.shape_cast %56 : vector<32xf32> to vector<1x32xf32>
    %58 = vector.broadcast %57 : vector<1x32xf32> to vector<16x32xf32>
    %59 = arith.addf %54, %58 : vector<16x32xf32>
    %60 = arith.addf %0, %59 : vector<16x32xf32>
    %cst_23 = arith.constant dense<0.000000e+00> : vector<16xf32>
    %61 = vector.multi_reduction <add>, %60, %cst_23 [1] : vector<16x32xf32> to vector<16xf32>
    %62 = vector.shape_cast %61 : vector<16xf32> to vector<16x1xf32>
    %cst_24 = arith.constant 3.200000e+01 : f32
    %63 = vector.broadcast %cst_24 : f32 to vector<16x1xf32>
    %64 = arith.divf %62, %63 : vector<16x1xf32>
    %65 = vector.broadcast %64 : vector<16x1xf32> to vector<16x32xf32>
    %66 = arith.subf %60, %65 : vector<16x32xf32>
    %67 = arith.mulf %66, %66 : vector<16x32xf32>
    %cst_25 = arith.constant dense<0.000000e+00> : vector<16xf32>
    %68 = vector.multi_reduction <add>, %67, %cst_25 [1] : vector<16x32xf32> to vector<16xf32>
    %69 = vector.shape_cast %68 : vector<16xf32> to vector<16x1xf32>
    %cst_26 = arith.constant 3.200000e+01 : f32
    %70 = vector.broadcast %cst_26 : f32 to vector<16x1xf32>
    %71 = arith.divf %69, %70 : vector<16x1xf32>
    %cst_27 = arith.constant 9.99999974E-6 : f32
    %72 = vector.broadcast %cst_27 : f32 to vector<16x1xf32>
    %73 = arith.addf %71, %72 : vector<16x1xf32>
    %74 = math.rsqrt %73 : vector<16x1xf32>
    %75 = vector.broadcast %74 : vector<16x1xf32> to vector<16x32xf32>
    %76 = arith.mulf %66, %75 : vector<16x32xf32>
    %c0_28 = arith.constant 0 : index
    %c0_29 = arith.constant 0 : index
    %77 = vector.load %arg12[%c0_28, %c0_29] : memref<1x32xf32, #tpu.memory_space<vmem>>, vector<1x32xf32>
    %78 = vector.shape_cast %77 : vector<1x32xf32> to vector<32xf32>
    %79 = vector.shape_cast %78 : vector<32xf32> to vector<1x32xf32>
    %80 = vector.broadcast %79 : vector<1x32xf32> to vector<16x32xf32>
    %81 = arith.mulf %76, %80 : vector<16x32xf32>
    %c0_30 = arith.constant 0 : index
    %c0_31 = arith.constant 0 : index
    %82 = vector.load %arg13[%c0_30, %c0_31] : memref<1x32xf32, #tpu.memory_space<vmem>>, vector<1x32xf32>
    %83 = vector.shape_cast %82 : vector<1x32xf32> to vector<32xf32>
    %84 = vector.shape_cast %83 : vector<32xf32> to vector<1x32xf32>
    %85 = vector.broadcast %84 : vector<1x32xf32> to vector<16x32xf32>
    %86 = arith.addf %81, %85 : vector<16x32xf32>
    %c0_32 = arith.constant 0 : index
    %c0_33 = arith.constant 0 : index
    %87 = vector.load %arg8[%c0_32, %c0_33] : memref<32x128xf32, #tpu.memory_space<vmem>>, vector<32x128xf32>
    %cst_34 = arith.constant dense<0.000000e+00> : vector<16x128xf32>
    %88 = tpu.matmul %86, %87, %cst_34 {dimension_numbers = #tpu.dot_dimension_numbers<[1], [0], [0], [1], [0, 0, 1, 1], [], []>} : vector<16x32xf32>, vector<32x128xf32>, vector<16x128xf32> -> vector<16x128xf32>
    %c0_35 = arith.constant 0 : index
    %c0_36 = arith.constant 0 : index
    %89 = vector.load %arg9[%c0_35, %c0_36] : memref<1x128xf32, #tpu.memory_space<vmem>>, vector<1x128xf32>
    %90 = vector.shape_cast %89 : vector<1x128xf32> to vector<128xf32>
    %91 = vector.shape_cast %90 : vector<128xf32> to vector<1x128xf32>
    %92 = vector.broadcast %91 : vector<1x128xf32> to vector<16x128xf32>
    %93 = arith.addf %88, %92 : vector<16x128xf32>
    %cst_37 = arith.constant 0.000000e+00 : f32
    %94 = vector.broadcast %cst_37 : f32 to vector<16x128xf32>
    %95 = arith.maximumf %93, %94 : vector<16x128xf32>
    %c0_38 = arith.constant 0 : index
    %c0_39 = arith.constant 0 : index
    %96 = vector.load %arg10[%c0_38, %c0_39] : memref<128x32xf32, #tpu.memory_space<vmem>>, vector<128x32xf32>
    %cst_40 = arith.constant dense<0.000000e+00> : vector<16x32xf32>
    %97 = tpu.matmul %95, %96, %cst_40 {dimension_numbers = #tpu.dot_dimension_numbers<[1], [0], [0], [1], [0, 0, 1, 1], [], []>} : vector<16x128xf32>, vector<128x32xf32>, vector<16x32xf32> -> vector<16x32xf32>
    %c0_41 = arith.constant 0 : index
    %c0_42 = arith.constant 0 : index
    %98 = vector.load %arg11[%c0_41, %c0_42] : memref<1x32xf32, #tpu.memory_space<vmem>>, vector<1x32xf32>
    %99 = vector.shape_cast %98 : vector<1x32xf32> to vector<32xf32>
    %100 = vector.shape_cast %99 : vector<32xf32> to vector<1x32xf32>
    %101 = vector.broadcast %100 : vector<1x32xf32> to vector<16x32xf32>
    %102 = arith.addf %97, %101 : vector<16x32xf32>
    %103 = arith.addf %86, %102 : vector<16x32xf32>
    %cst_43 = arith.constant dense<0.000000e+00> : vector<16xf32>
    %104 = vector.multi_reduction <add>, %103, %cst_43 [1] : vector<16x32xf32> to vector<16xf32>
    %105 = vector.shape_cast %104 : vector<16xf32> to vector<16x1xf32>
    %cst_44 = arith.constant 3.200000e+01 : f32
    %106 = vector.broadcast %cst_44 : f32 to vector<16x1xf32>
    %107 = arith.divf %105, %106 : vector<16x1xf32>
    %108 = vector.broadcast %107 : vector<16x1xf32> to vector<16x32xf32>
    %109 = arith.subf %103, %108 : vector<16x32xf32>
    %110 = arith.mulf %109, %109 : vector<16x32xf32>
    %cst_45 = arith.constant dense<0.000000e+00> : vector<16xf32>
    %111 = vector.multi_reduction <add>, %110, %cst_45 [1] : vector<16x32xf32> to vector<16xf32>
    %112 = vector.shape_cast %111 : vector<16xf32> to vector<16x1xf32>
    %cst_46 = arith.constant 3.200000e+01 : f32
    %113 = vector.broadcast %cst_46 : f32 to vector<16x1xf32>
    %114 = arith.divf %112, %113 : vector<16x1xf32>
    %cst_47 = arith.constant 9.99999974E-6 : f32
    %115 = vector.broadcast %cst_47 : f32 to vector<16x1xf32>
    %116 = arith.addf %114, %115 : vector<16x1xf32>
    %117 = math.rsqrt %116 : vector<16x1xf32>
    %118 = vector.broadcast %117 : vector<16x1xf32> to vector<16x32xf32>
    %119 = arith.mulf %109, %118 : vector<16x32xf32>
    %c0_48 = arith.constant 0 : index
    %c0_49 = arith.constant 0 : index
    %120 = vector.load %arg14[%c0_48, %c0_49] : memref<1x32xf32, #tpu.memory_space<vmem>>, vector<1x32xf32>
    %121 = vector.shape_cast %120 : vector<1x32xf32> to vector<32xf32>
    %122 = vector.shape_cast %121 : vector<32xf32> to vector<1x32xf32>
    %123 = vector.broadcast %122 : vector<1x32xf32> to vector<16x32xf32>
    %124 = arith.mulf %119, %123 : vector<16x32xf32>
    %c0_50 = arith.constant 0 : index
    %c0_51 = arith.constant 0 : index
    %125 = vector.load %arg15[%c0_50, %c0_51] : memref<1x32xf32, #tpu.memory_space<vmem>>, vector<1x32xf32>
    %126 = vector.shape_cast %125 : vector<1x32xf32> to vector<32xf32>
    %127 = vector.shape_cast %126 : vector<32xf32> to vector<1x32xf32>
    %128 = vector.broadcast %127 : vector<1x32xf32> to vector<16x32xf32>
    %129 = arith.addf %124, %128 : vector<16x32xf32>
    %c0_52 = arith.constant 0 : index
    %c0_53 = arith.constant 0 : index
    %130 = vector.load %arg16[%c0_52, %c0_53] : memref<16x32xf32, #tpu.memory_space<vmem>>, vector<16x32xf32>
    tpu.vector_store %arg16[%c0_52, %c0_53], %129 {strides = array<i32>} : memref<16x32xf32, #tpu.memory_space<vmem>>, vector<16x32xf32>,
    return
  }
  func.func @transform_0(%arg0: i32) -> (i32, i32) {
    %c0_i32 = arith.constant 0 : i32
    %c0_i32_0 = arith.constant 0 : i32
    %c0_i32_1 = arith.constant 0 : i32
    return %c0_i32, %c0_i32_0 : i32, i32
  }
  func.func @transform_1(%arg0: i32) -> (i32, i32) {
    %c0_i32 = arith.constant 0 : i32
    %c0_i32_0 = arith.constant 0 : i32
    %c0_i32_1 = arith.constant 0 : i32
    return %c0_i32, %c0_i32_0 : i32, i32
  }
  func.func @transform_2(%arg0: i32) -> (i32, i32) {
    %c0_i32 = arith.constant 0 : i32
    %c0_i32_0 = arith.constant 0 : i32
    %c0_i32_1 = arith.constant 0 : i32
    return %c0_i32, %c0_i32_0 : i32, i32
  }
  func.func @transform_3(%arg0: i32) -> (i32, i32) {
    %c0_i32 = arith.constant 0 : i32
    %c0_i32_0 = arith.constant 0 : i32
    %c0_i32_1 = arith.constant 0 : i32
    return %c0_i32, %c0_i32_0 : i32, i32
  }
  func.func @transform_4(%arg0: i32) -> (i32, i32) {
    %c0_i32 = arith.constant 0 : i32
    %c0_i32_0 = arith.constant 0 : i32
    %c0_i32_1 = arith.constant 0 : i32
    return %c0_i32, %c0_i32_0 : i32, i32
  }
  func.func @transform_5(%arg0: i32) -> (i32, i32, i32) {
    %c0_i32 = arith.constant 0 : i32
    %c0_i32_0 = arith.constant 0 : i32
    %c0_i32_1 = arith.constant 0 : i32
    %c0_i32_2 = arith.constant 0 : i32
    return %c0_i32, %c0_i32_0, %c0_i32_1 : i32, i32, i32
  }
  func.func @transform_6(%arg0: i32) -> (i32, i32) {
    %c0_i32 = arith.constant 0 : i32
    %c0_i32_0 = arith.constant 0 : i32
    %c0_i32_1 = arith.constant 0 : i32
    return %c0_i32, %c0_i32_0 : i32, i32
  }
  func.func @transform_7(%arg0: i32) -> (i32, i32) {
    %c0_i32 = arith.constant 0 : i32
    %c0_i32_0 = arith.constant 0 : i32
    %c0_i32_1 = arith.constant 0 : i32
    return %c0_i32, %c0_i32_0 : i32, i32
  }
  func.func @transform_8(%arg0: i32) -> (i32, i32) {
    %c0_i32 = arith.constant 0 : i32
    %c0_i32_0 = arith.constant 0 : i32
    %c0_i32_1 = arith.constant 0 : i32
    return %c0_i32, %c0_i32_0 : i32, i32
  }
  func.func @transform_9(%arg0: i32) -> (i32, i32) {
    %c0_i32 = arith.constant 0 : i32
    %c0_i32_0 = arith.constant 0 : i32
    %c0_i32_1 = arith.constant 0 : i32
    return %c0_i32, %c0_i32_0 : i32, i32
  }
  func.func @transform_10(%arg0: i32) -> (i32, i32) {
    %c0_i32 = arith.constant 0 : i32
    %c0_i32_0 = arith.constant 0 : i32
    %c0_i32_1 = arith.constant 0 : i32
    return %c0_i32, %c0_i32_0 : i32, i32
  }
  func.func @transform_11(%arg0: i32) -> (i32, i32) {
    %c0_i32 = arith.constant 0 : i32
    %c0_i32_0 = arith.constant 0 : i32
    %c0_i32_1 = arith.constant 0 : i32
    return %c0_i32, %c0_i32_0 : i32, i32
  }
  func.func @transform_12(%arg0: i32) -> (i32, i32) {
    %c0_i32 = arith.constant 0 : i32
    %c0_i32_0 = arith.constant 0 : i32
    %c0_i32_1 = arith.constant 0 : i32
    return %c0_i32, %c0_i32_0 : i32, i32
  }
  func.func @transform_13(%arg0: i32) -> (i32, i32) {
    %c0_i32 = arith.constant 0 : i32
    %c0_i32_0 = arith.constant 0 : i32
    %c0_i32_1 = arith.constant 0 : i32
    return %c0_i32, %c0_i32_0 : i32, i32
  }
  func.func @transform_14(%arg0: i32) -> (i32, i32) {
    %c0_i32 = arith.constant 0 : i32
    %c0_i32_0 = arith.constant 0 : i32
    %c0_i32_1 = arith.constant 0 : i32
    return %c0_i32, %c0_i32_0 : i32, i32
  }
  func.func @transform_15(%arg0: i32) -> (i32, i32) {
    %c0_i32 = arith.constant 0 : i32
    %c0_i32_0 = arith.constant 0 : i32
    %c0_i32_1 = arith.constant 0 : i32
    return %c0_i32, %c0_i32_0 : i32, i32
  }
}

</mosaic_0001>

<llo_original>
// kernel: tpu_custom_call.1
$region0: #{tpu_custom_call.1}
  #allocation0 [shape = 'u32[]', space=smem, size = 0x4, offset = 0x4, fixed_abs, tag = 'smem constant byte address 0x4 - core index']
  #allocation1 [shape = 'u32[144,128]{1,0:T(1,128)}', space=vmem, size = 0x12000, scoped, tag = 'internal scratch']
  %s0 = inlined_call_operand.hbm [shape: f32[16,32], index: 0, kind: input, shape index: {}]
  %s1 = inlined_call_operand.hbm [shape: f32[16,16], index: 1, kind: input, shape index: {}]
  %s2 = inlined_call_operand.vmem [shape: f32[32,32], index: 2, kind: input, shape index: {}]
  %s3 = inlined_call_operand.vmem [shape: f32[32,32], index: 3, kind: input, shape index: {}]
  %s4 = inlined_call_operand.vmem [shape: f32[32,32], index: 4, kind: input, shape index: {}]
  %s5 = inlined_call_operand.vmem [shape: f32[4,8,32], index: 5, kind: input, shape index: {}]
  %s6 = inlined_call_operand.vmem [shape: f32[1,32], index: 6, kind: input, shape index: {}]
  %s7 = inlined_call_operand.vmem [shape: f32[32,128], index: 7, kind: input, shape index: {}]
  %s8 = inlined_call_operand.vmem [shape: f32[1,128], index: 8, kind: input, shape index: {}]
  %s9 = inlined_call_operand.vmem [shape: f32[128,32], index: 9, kind: input, shape index: {}]
  %s10 = inlined_call_operand.vmem [shape: f32[1,32], index: 10, kind: input, shape index: {}]
  %s11 = inlined_call_operand.vmem [shape: f32[1,32], index: 11, kind: input, shape index: {}]
  %s12 = inlined_call_operand.vmem [shape: f32[1,32], index: 12, kind: input, shape index: {}]
  %s13 = inlined_call_operand.vmem [shape: f32[1,32], index: 13, kind: input, shape index: {}]
  %s14 = inlined_call_operand.vmem [shape: f32[1,32], index: 14, kind: input, shape index: {}]
  %s15 = inlined_call_operand.hbm [shape: f32[16,32], index: 15, kind: output, shape index: {}]
  %s16 = sld [smem:[#allocation0]]
  $region78: #{tpu_custom_call.1} parent=0
    _
  %s18 = ssub.s32 1, %s16
  %s19 = scalar_select 0, %s18, %s16
  $region1: #{tpu_custom_call.1} parent=0
    #allocation2 [shape = 'u8[8192]{0}', space=vmem, size = 0x2000, scoped, tag = 'input window, operand 0, single buffered']
    #allocation3 [shape = 's32[1]{0}', space=sflag, size = 0x4, scoped, tag = 'scoped memory for tpu_custom_call.1']
    #allocation4 [shape = 's32[1]{0}', space=sflag, size = 0x4, scoped, tag = 'scoped memory for tpu_custom_call.1']
    #allocation5 [shape = 'u8[8192]{0}', space=vmem, size = 0x2000, scoped, tag = 'input window, operand 1, single buffered']
    #allocation6 [shape = 's32[1]{0}', space=sflag, size = 0x4, scoped, tag = 'scoped memory for tpu_custom_call.1']
    #allocation7 [shape = 'u8[8192]{0}', space=vmem, size = 0x2000, scoped, tag = 'output window, operand 0, single buffered']
    %20 = vsyncpa [#allocation3], 0
    %21 = vsyncpa [#allocation6], 0
    %22 = vsyncpa [#allocation4], 0
    // Predicated region
    $region2: #{tpu_custom_call.1} parent=1 // pred_check
      _
    $region3: #{tpu_custom_call.1} parent=1 // pred_check_branch
      %24 = sbr.rel (0) target = $region5
    $region4: #{tpu_custom_call.1} parent=1 // pred_region
      %s26 = ssub.s32 256, 256
      %27 = vsyncadd [#allocation3], %s26
      %s28 = sshll.u32 [#allocation2], 4
      %s29 = int_to_ptr.vmem [resolvable:$true] %s28
      %34 = dma.hbm_to_vmem [thread:$0]  %s0, 256, %s29, [#allocation3], 128, 128, 8
    $region5: #{tpu_custom_call.1} parent=1 // pred_fallthru
      _
    // Predicated region
    $region6: #{tpu_custom_call.1} parent=1 // pred_check
      _
    $region7: #{tpu_custom_call.1} parent=1 // pred_check_branch
      %36 = sbr.rel (0) target = $region9
    $region8: #{tpu_custom_call.1} parent=1 // pred_region
      %s38 = ssub.s32 256, 256
      %39 = vsyncadd [#allocation6], %s38
      %s40 = sshll.u32 [#allocation5], 4
      %s41 = int_to_ptr.vmem [resolvable:$true] %s40
      %46 = dma.hbm_to_vmem [thread:$0]  %s1, 256, %s41, [#allocation6], 128, 128, 8
    $region9: #{tpu_custom_call.1} parent=1 // pred_fallthru
      _
    // Predicated region
    $region10: #{tpu_custom_call.1} parent=1 // pred_check
      _
    $region11: #{tpu_custom_call.1} parent=1 // pred_check_branch
      %48 = sbr.rel (0) target = $region13
    $region12: #{tpu_custom_call.1} parent=1 // pred_region
      _
    $region13: #{tpu_custom_call.1} parent=1 // pred_fallthru
      _
    // Predicated region
    $region14: #{tpu_custom_call.1} parent=1 // pred_check
      _
    $region15: #{tpu_custom_call.1} parent=1 // pred_check_branch
      %50 = sbr.rel (0) target = $region17
    $region16: #{tpu_custom_call.1} parent=1 // pred_region
      _
    $region17: #{tpu_custom_call.1} parent=1 // pred_fallthru
      _
    // Predicated region
    $region18: #{tpu_custom_call.1} parent=1 // pred_check
      _
    $region19: #{tpu_custom_call.1} parent=1 // pred_check_branch
      %52 = sbr.rel (0) target = $region21
    $region20: #{tpu_custom_call.1} parent=1 // pred_region
      _
    $region21: #{tpu_custom_call.1} parent=1 // pred_fallthru
      _
    // Predicated region
    $region22: #{tpu_custom_call.1} parent=1 // pred_check
      _
    $region23: #{tpu_custom_call.1} parent=1 // pred_check_branch
      %54 = sbr.rel (0) target = $region25
    $region24: #{tpu_custom_call.1} parent=1 // pred_region
      _
    $region25: #{tpu_custom_call.1} parent=1 // pred_fallthru
      _
    // Predicated region
    $region26: #{tpu_custom_call.1} parent=1 // pred_check
      _
    $region27: #{tpu_custom_call.1} parent=1 // pred_check_branch
      %56 = sbr.rel (0) target = $region29
    $region28: #{tpu_custom_call.1} parent=1 // pred_region
      _
    $region29: #{tpu_custom_call.1} parent=1 // pred_fallthru
      _
    // Predicated region
    $region30: #{tpu_custom_call.1} parent=1 // pred_check
      _
    $region31: #{tpu_custom_call.1} parent=1 // pred_check_branch
      %58 = sbr.rel (0) target = $region33
    $region32: #{tpu_custom_call.1} parent=1 // pred_region
      _
    $region33: #{tpu_custom_call.1} parent=1 // pred_fallthru
      _
    // Predicated region
    $region34: #{tpu_custom_call.1} parent=1 // pred_check
      _
    $region35: #{tpu_custom_call.1} parent=1 // pred_check_branch
      %60 = sbr.rel (0) target = $region37
    $region36: #{tpu_custom_call.1} parent=1 // pred_region
      _
    $region37: #{tpu_custom_call.1} parent=1 // pred_fallthru
      _
    // Predicated region
    $region38: #{tpu_custom_call.1} parent=1 // pred_check
      _
    $region39: #{tpu_custom_call.1} parent=1 // pred_check_branch
      %62 = sbr.rel (0) target = $region41
    $region40: #{tpu_custom_call.1} parent=1 // pred_region
      _
    $region41: #{tpu_custom_call.1} parent=1 // pred_fallthru
      _
    // Predicated region
    $region42: #{tpu_custom_call.1} parent=1 // pred_check
      _
    $region43: #{tpu_custom_call.1} parent=1 // pred_check_branch
      %64 = sbr.rel (0) target = $region45
    $region44: #{tpu_custom_call.1} parent=1 // pred_region
      _
    $region45: #{tpu_custom_call.1} parent=1 // pred_fallthru
      _
    // Predicated region
    $region46: #{tpu_custom_call.1} parent=1 // pred_check
      _
    $region47: #{tpu_custom_call.1} parent=1 // pred_check_branch
      %66 = sbr.rel (0) target = $region49
    $region48: #{tpu_custom_call.1} parent=1 // pred_region
      _
    $region49: #{tpu_custom_call.1} parent=1 // pred_fallthru
      _
    // Predicated region
    $region50: #{tpu_custom_call.1} parent=1 // pred_check
      _
    $region51: #{tpu_custom_call.1} parent=1 // pred_check_branch
      %68 = sbr.rel (0) target = $region53
    $region52: #{tpu_custom_call.1} parent=1 // pred_region
      _
    $region53: #{tpu_custom_call.1} parent=1 // pred_fallthru
      _
    // Predicated region
    $region54: #{tpu_custom_call.1} parent=1 // pred_check
      _
    $region55: #{tpu_custom_call.1} parent=1 // pred_check_branch
      %70 = sbr.rel (0) target = $region57
    $region56: #{tpu_custom_call.1} parent=1 // pred_region
      _
    $region57: #{tpu_custom_call.1} parent=1 // pred_fallthru
      _
    // Predicated region
    $region58: #{tpu_custom_call.1} parent=1 // pred_check
      _
    $region59: #{tpu_custom_call.1} parent=1 // pred_check_branch
      %72 = sbr.rel (0) target = $region61
    $region60: #{tpu_custom_call.1} parent=1 // pred_region
      _
    $region61: #{tpu_custom_call.1} parent=1 // pred_fallthru
      _
    // Predicated region
    $region62: #{tpu_custom_call.1} parent=1 // pred_check
      _
    $region63: #{tpu_custom_call.1} parent=1 // pred_check_branch
      %74 = sbr.rel (0) target = $region65
    $region64: #{tpu_custom_call.1} parent=1 // pred_region
      %75 = dma.done [#allocation3], 256
    $region65: #{tpu_custom_call.1} parent=1 // pred_fallthru
      _
    // Predicated region
    $region66: #{tpu_custom_call.1} parent=1 // pred_check
      _
    $region67: #{tpu_custom_call.1} parent=1 // pred_check_branch
      %77 = sbr.rel (0) target = $region69
    $region68: #{tpu_custom_call.1} parent=1 // pred_region
      %78 = dma.done [#allocation6], 256
    $region69: #{tpu_custom_call.1} parent=1 // pred_fallthru
      _
    %v79 = vld [vmem:[#allocation2] sm:$0xff]
    %v80 = vld [vmem:[#allocation2 + $0x8] sm:$0xff]
    %v81 = vld [vmem:[%s2] sm:$0xff]
    %v82 = vld [vmem:[%s2 + $0x8] sm:$0xff]
    %v83 = vld [vmem:[%s2 + $0x10] sm:$0xff]
    %v84 = vld [vmem:[%s2 + $0x18] sm:$0xff]
    %vm85 = vcmask 261120
    %v87 = vsel %vm85, %v79, 0
    %v90 = vsel %vm85, %v80, 0
    %92 = vmatprep.subr.mxu0 0.0
    %93 = vmatpush1.msra.mxu0 %v81
    %94 = vmatprep.subr.mxu0 0.0
    %95 = vmatpush1.msra.mxu0 %v82
    %96 = vmatprep.subr.mxu0 0.0
    %97 = vmatpush1.msra.mxu0 %v83
    %98 = vmatprep.subr.mxu0 0.0
    %99 = vmatpush1.msra.mxu0 %v84
    %100 = vmatprep.subr.mxu0 0.0
    %101 = vmatpush1.msra.mxu0 0.0
    %102 = vmatprep.subr.mxu0 0.0
    %103 = vmatpush1.msra.mxu0 0.0
    %104 = vmatprep.subr.mxu0 0.0
    %105 = vmatpush1.msra.mxu0 0.0
    %106 = vmatprep.subr.mxu0 0.0
    %107 = vmatpush1.msra.mxu0 0.0
    %108 = vmatprep.subr.mxu0 0.0
    %109 = vmatpush1.msra.mxu0 0.0
    %110 = vmatprep.subr.mxu0 0.0
    %111 = vmatpush1.msra.mxu0 0.0
    %112 = vmatprep.subr.mxu0 0.0
    %113 = vmatpush1.msra.mxu0 0.0
    %114 = vmatprep.subr.mxu0 0.0
    %115 = vmatpush1.msra.mxu0 0.0
    %116 = vmatprep.subr.mxu0 0.0
    %117 = vmatpush1.msra.mxu0 0.0
    %118 = vmatprep.subr.mxu0 0.0
    %119 = vmatpush1.msra.mxu0 0.0
    %120 = vmatprep.subr.mxu0 0.0
    %121 = vmatpush1.msra.mxu0 0.0
    %122 = vmatprep.subr.mxu0 0.0
    %123 = vmatpush1.msra.mxu0 0.0
    %124 = vmatprep.subr.mxu0 0.0
    %125 = vmatpush1.msra.mxu0 0.0
    %126 = vmatprep.subr.mxu0 0.0
    %127 = vmatpush1.msra.mxu0 0.0
    %128 = vmatprep.subr.mxu0 0.0
    %129 = vmatpush1.msra.mxu0 0.0
    %130 = vmatprep.subr.mxu0 0.0
    %131 = vmatpush1.msra.mxu0 0.0
    %132 = vmatprep.subr.mxu0 0.0
    %133 = vmatpush1.msra.mxu0 0.0
    %134 = vmatprep.subr.mxu0 0.0
    %135 = vmatpush1.msra.mxu0 0.0
    %136 = vmatprep.subr.mxu0 0.0
    %137 = vmatpush1.msra.mxu0 0.0
    %138 = vmatprep.subr.mxu0 0.0
    %139 = vmatpush1.msra.mxu0 0.0
    %140 = vmatprep.subr.mxu0 0.0
    %141 = vmatpush1.msra.mxu0 0.0
    %142 = vmatprep.subr.mxu0 0.0
    %143 = vmatpush1.msra.mxu0 0.0
    %144 = vmatprep.subr.mxu0 0.0
    %145 = vmatpush1.msra.mxu0 0.0
    %146 = vmatprep.subr.mxu0 0.0
    %147 = vmatpush1.msra.mxu0 0.0
    %148 = vmatprep.subr.mxu0 0.0
    %149 = vmatpush1.msra.mxu0 0.0
    %150 = vmatprep.subr.mxu0 0.0
    %151 = vmatpush1.msra.mxu0 0.0
    %152 = vmatprep.subr.mxu0 0.0
    %153 = vmatpush1.msra.mxu0 0.0
    %154 = vmatprep.subr.mxu0 0.0
    %155 = vmatpush1.msra.mxu0 0.0
    %156 = vmatprep.mubr.f32.mxu0 0.0
    %157 = vmatmul.mubr.f32.gmra.mrb[0].mxu0 %v87
    %v158 = vpop.f32.mrb[0].mxu0
    %v159 = vadd.f32 0.0, %v158
    %v160 = vpop.f32.mrb[0].mxu0
    %161 = vmatprep.mubr.f32.mxu0 0.0
    %162 = vmatmul.mubr.f32.gmra.mrb[0].mxu0 %v90
    %v163 = vpop.f32.mrb[0].mxu0
    %v164 = vadd.f32 0.0, %v163
    %v165 = vpop.f32.mrb[0].mxu0
    %166 = vdwg.mxu0
    %v167 = vmul.f32 %v159, 0.35355338
    %v168 = vmul.f32 %v164, 0.35355338
    %v169 = vld [vmem:[%s3] sm:$0xff]
    %v170 = vld [vmem:[%s3 + $0x8] sm:$0xff]
    %v171 = vld [vmem:[%s3 + $0x10] sm:$0xff]
    %v172 = vld [vmem:[%s3 + $0x18] sm:$0xff]
    %173 = vmatprep.subr.mxu0 0.0
    %174 = vmatpush1.msra.mxu0 %v169
    %175 = vmatprep.subr.mxu0 0.0
    %176 = vmatpush1.msra.mxu0 %v170
    %177 = vmatprep.subr.mxu0 0.0
    %178 = vmatpush1.msra.mxu0 %v171
    %179 = vmatprep.subr.mxu0 0.0
    %180 = vmatpush1.msra.mxu0 %v172
    %181 = vmatprep.subr.mxu0 0.0
    %182 = vmatpush1.msra.mxu0 0.0
    %183 = vmatprep.subr.mxu0 0.0
    %184 = vmatpush1.msra.mxu0 0.0
    %185 = vmatprep.subr.mxu0 0.0
    %186 = vmatpush1.msra.mxu0 0.0
    %187 = vmatprep.subr.mxu0 0.0
    %188 = vmatpush1.msra.mxu0 0.0
    %189 = vmatprep.subr.mxu0 0.0
    %190 = vmatpush1.msra.mxu0 0.0
    %191 = vmatprep.subr.mxu0 0.0
    %192 = vmatpush1.msra.mxu0 0.0
    %193 = vmatprep.subr.mxu0 0.0
    %194 = vmatpush1.msra.mxu0 0.0
    %195 = vmatprep.subr.mxu0 0.0
    %196 = vmatpush1.msra.mxu0 0.0
    %197 = vmatprep.subr.mxu0 0.0
    %198 = vmatpush1.msra.mxu0 0.0
    %199 = vmatprep.subr.mxu0 0.0
    %200 = vmatpush1.msra.mxu0 0.0
    %201 = vmatprep.subr.mxu0 0.0
    %202 = vmatpush1.msra.mxu0 0.0
    %203 = vmatprep.subr.mxu0 0.0
    %204 = vmatpush1.msra.mxu0 0.0
    %205 = vmatprep.subr.mxu0 0.0
    %206 = vmatpush1.msra.mxu0 0.0
    %207 = vmatprep.subr.mxu0 0.0
    %208 = vmatpush1.msra.mxu0 0.0
    %209 = vmatprep.subr.mxu0 0.0
    %210 = vmatpush1.msra.mxu0 0.0
    %211 = vmatprep.subr.mxu0 0.0
    %212 = vmatpush1.msra.mxu0 0.0
    %213 = vmatprep.subr.mxu0 0.0
    %214 = vmatpush1.msra.mxu0 0.0
    %215 = vmatprep.subr.mxu0 0.0
    %216 = vmatpush1.msra.mxu0 0.0
    %217 = vmatprep.subr.mxu0 0.0
    %218 = vmatpush1.msra.mxu0 0.0
    %219 = vmatprep.subr.mxu0 0.0
    %220 = vmatpush1.msra.mxu0 0.0
    %221 = vmatprep.subr.mxu0 0.0
    %222 = vmatpush1.msra.mxu0 0.0
    %223 = vmatprep.subr.mxu0 0.0
    %224 = vmatpush1.msra.mxu0 0.0
    %225 = vmatprep.subr.mxu0 0.0
    %226 = vmatpush1.msra.mxu0 0.0
    %227 = vmatprep.subr.mxu0 0.0
    %228 = vmatpush1.msra.mxu0 0.0
    %229 = vmatprep.subr.mxu0 0.0
    %230 = vmatpush1.msra.mxu0 0.0
    %231 = vmatprep.subr.mxu0 0.0
    %232 = vmatpush1.msra.mxu0 0.0
    %233 = vmatprep.subr.mxu0 0.0
    %234 = vmatpush1.msra.mxu0 0.0
    %235 = vmatprep.subr.mxu0 0.0
    %236 = vmatpush1.msra.mxu0 0.0
    %237 = vmatprep.mubr.f32.mxu0 0.0
    %238 = vmatmul.mubr.f32.gmra.mrb[0].mxu0 %v87
    %v239 = vpop.f32.mrb[0].mxu0
    %v240 = vadd.f32 0.0, %v239
    %v241 = vpop.f32.mrb[0].mxu0
    %242 = vmatprep.mubr.f32.mxu0 0.0
    %243 = vmatmul.mubr.f32.gmra.mrb[0].mxu0 %v90
    %v244 = vpop.f32.mrb[0].mxu0
    %v245 = vadd.f32 0.0, %v244
    %v246 = vpop.f32.mrb[0].mxu0
    %247 = vdwg.mxu0
    %v248 = vld [vmem:[%s4] sm:$0xff]
    %v249 = vld [vmem:[%s4 + $0x8] sm:$0xff]
    %v250 = vld [vmem:[%s4 + $0x10] sm:$0xff]
    %v251 = vld [vmem:[%s4 + $0x18] sm:$0xff]
    %252 = vmatprep.subr.mxu0 0.0
    %253 = vmatpush1.msra.mxu0 %v248
    %254 = vmatprep.subr.mxu0 0.0
    %255 = vmatpush1.msra.mxu0 %v249
    %256 = vmatprep.subr.mxu0 0.0
    %257 = vmatpush1.msra.mxu0 %v250
    %258 = vmatprep.subr.mxu0 0.0
    %259 = vmatpush1.msra.mxu0 %v251
    %260 = vmatprep.subr.mxu0 0.0
    %261 = vmatpush1.msra.mxu0 0.0
    %262 = vmatprep.subr.mxu0 0.0
    %263 = vmatpush1.msra.mxu0 0.0
    %264 = vmatprep.subr.mxu0 0.0
    %265 = vmatpush1.msra.mxu0 0.0
    %266 = vmatprep.subr.mxu0 0.0
    %267 = vmatpush1.msra.mxu0 0.0
    %268 = vmatprep.subr.mxu0 0.0
    %269 = vmatpush1.msra.mxu0 0.0
    %270 = vmatprep.subr.mxu0 0.0
    %271 = vmatpush1.msra.mxu0 0.0
    %272 = vmatprep.subr.mxu0 0.0
    %273 = vmatpush1.msra.mxu0 0.0
    %274 = vmatprep.subr.mxu0 0.0
    %275 = vmatpush1.msra.mxu0 0.0
    %276 = vmatprep.subr.mxu0 0.0
    %277 = vmatpush1.msra.mxu0 0.0
    %278 = vmatprep.subr.mxu0 0.0
    %279 = vmatpush1.msra.mxu0 0.0
    %280 = vmatprep.subr.mxu0 0.0
    %281 = vmatpush1.msra.mxu0 0.0
    %282 = vmatprep.subr.mxu0 0.0
    %283 = vmatpush1.msra.mxu0 0.0
    %284 = vmatprep.subr.mxu0 0.0
    %285 = vmatpush1.msra.mxu0 0.0
    %286 = vmatprep.subr.mxu0 0.0
    %287 = vmatpush1.msra.mxu0 0.0
    %288 = vmatprep.subr.mxu0 0.0
    %289 = vmatpush1.msra.mxu0 0.0
    %290 = vmatprep.subr.mxu0 0.0
    %291 = vmatpush1.msra.mxu0 0.0
    %292 = vmatprep.subr.mxu0 0.0
    %293 = vmatpush1.msra.mxu0 0.0
    %294 = vmatprep.subr.mxu0 0.0
    %295 = vmatpush1.msra.mxu0 0.0
    %296 = vmatprep.subr.mxu0 0.0
    %297 = vmatpush1.msra.mxu0 0.0
    %298 = vmatprep.subr.mxu0 0.0
    %299 = vmatpush1.msra.mxu0 0.0
    %300 = vmatprep.subr.mxu0 0.0
    %301 = vmatpush1.msra.mxu0 0.0
    %302 = vmatprep.subr.mxu0 0.0
    %303 = vmatpush1.msra.mxu0 0.0
    %304 = vmatprep.subr.mxu0 0.0
    %305 = vmatpush1.msra.mxu0 0.0
    %306 = vmatprep.subr.mxu0 0.0
    %307 = vmatpush1.msra.mxu0 0.0
    %308 = vmatprep.subr.mxu0 0.0
    %309 = vmatpush1.msra.mxu0 0.0
    %310 = vmatprep.subr.mxu0 0.0
    %311 = vmatpush1.msra.mxu0 0.0
    %312 = vmatprep.subr.mxu0 0.0
    %313 = vmatpush1.msra.mxu0 0.0
    %314 = vmatprep.subr.mxu0 0.0
    %315 = vmatpush1.msra.mxu0 0.0
    %316 = vmatprep.mubr.f32.mxu0 0.0
    %317 = vmatmul.mubr.f32.gmra.mrb[0].mxu0 %v87
    %v318 = vpop.f32.mrb[0].mxu0
    %v319 = vadd.f32 0.0, %v318
    %v320 = vpop.f32.mrb[0].mxu0
    %321 = vmatprep.mubr.f32.mxu0 0.0
    %322 = vmatmul.mubr.f32.gmra.mrb[0].mxu0 %v90
    %v323 = vpop.f32.mrb[0].mxu0
    %v324 = vadd.f32 0.0, %v323
    %v325 = vpop.f32.mrb[0].mxu0
    %326 = vdwg.mxu0
    %329 = vrot.lane.b32.xlu0 %v167, 120
    %v330 = vpop.permute.xlu0 %329
    %331 = vrot.lane.b32.xlu0 %v168, 120
    %v332 = vpop.permute.xlu0 %331
    %333 = vrot.lane.b32.xlu0 %v167, 112
    %v334 = vpop.permute.xlu0 %333
    %335 = vrot.lane.b32.xlu0 %v168, 112
    %v336 = vpop.permute.xlu0 %335
    %337 = vrot.lane.b32.xlu0 %v167, 104
    %v338 = vpop.permute.xlu0 %337
    %339 = vrot.lane.b32.xlu0 %v168, 104
    %v340 = vpop.permute.xlu0 %339
    %343 = vrot.lane.b32.xlu0 %v240, 120
    %v344 = vpop.permute.xlu0 %343
    %345 = vrot.lane.b32.xlu0 %v245, 120
    %v346 = vpop.permute.xlu0 %345
    %347 = vrot.lane.b32.xlu0 %v240, 112
    %v348 = vpop.permute.xlu0 %347
    %349 = vrot.lane.b32.xlu0 %v245, 112
    %v350 = vpop.permute.xlu0 %349
    %351 = vrot.lane.b32.xlu0 %v240, 104
    %v352 = vpop.permute.xlu0 %351
    %353 = vrot.lane.b32.xlu0 %v245, 104
    %v354 = vpop.permute.xlu0 %353
    %357 = vrot.lane.b32.xlu0 %v319, 120
    %v358 = vpop.permute.xlu0 %357
    %359 = vrot.lane.b32.xlu0 %v324, 120
    %v360 = vpop.permute.xlu0 %359
    %363 = vrot.lane.b32.xlu0 %v319, 112
    %v364 = vpop.permute.xlu0 %363
    %365 = vrot.lane.b32.xlu0 %v324, 112
    %v366 = vpop.permute.xlu0 %365
    %369 = vrot.lane.b32.xlu0 %v319, 104
    %v370 = vpop.permute.xlu0 %369
    %371 = vrot.lane.b32.xlu0 %v324, 104
    %v372 = vpop.permute.xlu0 %371
    %v375 = vld [vmem:[#allocation5] sm:$0xff]
    %v376 = vld [vmem:[#allocation5 + $0x8] sm:$0xff]
    %vm377 = vcmask 64512
    %v378 = vsel %vm377, %v167, 0
    %v380 = vsel %vm377, %v168, 0
    %v382 = vsel %vm377, %v240, 0
    %v384 = vsel %vm377, %v245, 0
    %386 = vmatprep.subr.mxu0 0.0
    %387 = vmatpush1.xpose.msra.mxu0 %v382
    %388 = vmatprep.subr.mxu0 0.0
    %389 = vmatpush1.xpose.msra.mxu0 %v384
    %390 = vmatprep.subr.mxu0 0.0
    %391 = vmatpush1.xpose.msra.mxu0 0.0
    %392 = vmatprep.subr.mxu0 0.0
    %393 = vmatpush1.xpose.msra.mxu0 0.0
    %394 = vmatprep.subr.mxu0 0.0
    %395 = vmatpush1.xpose.msra.mxu0 0.0
    %396 = vmatprep.subr.mxu0 0.0
    %397 = vmatpush1.xpose.msra.mxu0 0.0
    %398 = vmatprep.subr.mxu0 0.0
    %399 = vmatpush1.xpose.msra.mxu0 0.0
    %400 = vmatprep.subr.mxu0 0.0
    %401 = vmatpush1.xpose.msra.mxu0 0.0
    %402 = vmatprep.subr.mxu0 0.0
    %403 = vmatpush1.xpose.msra.mxu0 0.0
    %404 = vmatprep.subr.mxu0 0.0
    %405 = vmatpush1.xpose.msra.mxu0 0.0
    %406 = vmatprep.subr.mxu0 0.0
    %407 = vmatpush1.xpose.msra.mxu0 0.0
    %408 = vmatprep.subr.mxu0 0.0
    %409 = vmatpush1.xpose.msra.mxu0 0.0
    %410 = vmatprep.subr.mxu0 0.0
    %411 = vmatpush1.xpose.msra.mxu0 0.0
    %412 = vmatprep.subr.mxu0 0.0
    %413 = vmatpush1.xpose.msra.mxu0 0.0
    %414 = vmatprep.subr.mxu0 0.0
    %415 = vmatpush1.xpose.msra.mxu0 0.0
    %416 = vmatprep.subr.mxu0 0.0
    %417 = vmatpush1.xpose.msra.mxu0 0.0
    %418 = vmatprep.subr.mxu0 0.0
    %419 = vmatpush1.xpose.msra.mxu0 0.0
    %420 = vmatprep.subr.mxu0 0.0
    %421 = vmatpush1.xpose.msra.mxu0 0.0
    %422 = vmatprep.subr.mxu0 0.0
    %423 = vmatpush1.xpose.msra.mxu0 0.0
    %424 = vmatprep.subr.mxu0 0.0
    %425 = vmatpush1.xpose.msra.mxu0 0.0
    %426 = vmatprep.subr.mxu0 0.0
    %427 = vmatpush1.xpose.msra.mxu0 0.0
    %428 = vmatprep.subr.mxu0 0.0
    %429 = vmatpush1.xpose.msra.mxu0 0.0
    %430 = vmatprep.subr.mxu0 0.0
    %431 = vmatpush1.xpose.msra.mxu0 0.0
    %432 = vmatprep.subr.mxu0 0.0
    %433 = vmatpush1.xpose.msra.mxu0 0.0
    %434 = vmatprep.subr.mxu0 0.0
    %435 = vmatpush1.xpose.msra.mxu0 0.0
    %436 = vmatprep.subr.mxu0 0.0
    %437 = vmatpush1.xpose.msra.mxu0 0.0
    %438 = vmatprep.subr.mxu0 0.0
    %439 = vmatpush1.xpose.msra.mxu0 0.0
    %440 = vmatprep.subr.mxu0 0.0
    %441 = vmatpush1.xpose.msra.mxu0 0.0
    %442 = vmatprep.subr.mxu0 0.0
    %443 = vmatpush1.xpose.msra.mxu0 0.0
    %444 = vmatprep.subr.mxu0 0.0
    %445 = vmatpush1.xpose.msra.mxu0 0.0
    %446 = vmatprep.subr.mxu0 0.0
    %447 = vmatpush1.xpose.msra.mxu0 0.0
    %448 = vmatprep.subr.mxu0 0.0
    %449 = vmatpush1.xpose.msra.mxu0 0.0
    %450 = vmatprep.mubr.f32.mxu0 0.0
    %451 = vmatmul.mubr.f32.gmra.mrb[0].mxu0 %v378
    %v452 = vpop.f32.mrb[0].mxu0
    %v453 = vadd.f32 %v375, %v452
    %v454 = vpop.f32.mrb[0].mxu0
    %455 = vmatprep.mubr.f32.mxu0 0.0
    %456 = vmatmul.mubr.f32.gmra.mrb[0].mxu0 %v380
    %v457 = vpop.f32.mrb[0].mxu0
    %v458 = vadd.f32 %v376, %v457
    %v459 = vpop.f32.mrb[0].mxu0
    %460 = vdwg.mxu0
    %v461 = vsel %vm377, %v330, 0
    %v463 = vsel %vm377, %v332, 0
    %v465 = vsel %vm377, %v344, 0
    %v467 = vsel %vm377, %v346, 0
    %469 = vmatprep.subr.mxu0 0.0
    %470 = vmatpush1.xpose.msra.mxu0 %v465
    %471 = vmatprep.subr.mxu0 0.0
    %472 = vmatpush1.xpose.msra.mxu0 %v467
    %473 = vmatprep.subr.mxu0 0.0
    %474 = vmatpush1.xpose.msra.mxu0 0.0
    %475 = vmatprep.subr.mxu0 0.0
    %476 = vmatpush1.xpose.msra.mxu0 0.0
    %477 = vmatprep.subr.mxu0 0.0
    %478 = vmatpush1.xpose.msra.mxu0 0.0
    %479 = vmatprep.subr.mxu0 0.0
    %480 = vmatpush1.xpose.msra.mxu0 0.0
    %481 = vmatprep.subr.mxu0 0.0
    %482 = vmatpush1.xpose.msra.mxu0 0.0
    %483 = vmatprep.subr.mxu0 0.0
    %484 = vmatpush1.xpose.msra.mxu0 0.0
    %485 = vmatprep.subr.mxu0 0.0
    %486 = vmatpush1.xpose.msra.mxu0 0.0
    %487 = vmatprep.subr.mxu0 0.0
    %488 = vmatpush1.xpose.msra.mxu0 0.0
    %489 = vmatprep.subr.mxu0 0.0
    %490 = vmatpush1.xpose.msra.mxu0 0.0
    %491 = vmatprep.subr.mxu0 0.0
    %492 = vmatpush1.xpose.msra.mxu0 0.0
    %493 = vmatprep.subr.mxu0 0.0
    %494 = vmatpush1.xpose.msra.mxu0 0.0
    %495 = vmatprep.subr.mxu0 0.0
    %496 = vmatpush1.xpose.msra.mxu0 0.0
    %497 = vmatprep.subr.mxu0 0.0
    %498 = vmatpush1.xpose.msra.mxu0 0.0
    %499 = vmatprep.subr.mxu0 0.0
    %500 = vmatpush1.xpose.msra.mxu0 0.0
    %501 = vmatprep.subr.mxu0 0.0
    %502 = vmatpush1.xpose.msra.mxu0 0.0
    %503 = vmatprep.subr.mxu0 0.0
    %504 = vmatpush1.xpose.msra.mxu0 0.0
    %505 = vmatprep.subr.mxu0 0.0
    %506 = vmatpush1.xpose.msra.mxu0 0.0
    %507 = vmatprep.subr.mxu0 0.0
    %508 = vmatpush1.xpose.msra.mxu0 0.0
    %509 = vmatprep.subr.mxu0 0.0
    %510 = vmatpush1.xpose.msra.mxu0 0.0
    %511 = vmatprep.subr.mxu0 0.0
    %512 = vmatpush1.xpose.msra.mxu0 0.0
    %513 = vmatprep.subr.mxu0 0.0
    %514 = vmatpush1.xpose.msra.mxu0 0.0
    %515 = vmatprep.subr.mxu0 0.0
    %516 = vmatpush1.xpose.msra.mxu0 0.0
    %517 = vmatprep.subr.mxu0 0.0
    %518 = vmatpush1.xpose.msra.mxu0 0.0
    %519 = vmatprep.subr.mxu0 0.0
    %520 = vmatpush1.xpose.msra.mxu0 0.0
    %521 = vmatprep.subr.mxu0 0.0
    %522 = vmatpush1.xpose.msra.mxu0 0.0
    %523 = vmatprep.subr.mxu0 0.0
    %524 = vmatpush1.xpose.msra.mxu0 0.0
    %525 = vmatprep.subr.mxu0 0.0
    %526 = vmatpush1.xpose.msra.mxu0 0.0
    %527 = vmatprep.subr.mxu0 0.0
    %528 = vmatpush1.xpose.msra.mxu0 0.0
    %529 = vmatprep.subr.mxu0 0.0
    %530 = vmatpush1.xpose.msra.mxu0 0.0
    %531 = vmatprep.subr.mxu0 0.0
    %532 = vmatpush1.xpose.msra.mxu0 0.0
    %533 = vmatprep.mubr.f32.mxu0 0.0
    %534 = vmatmul.mubr.f32.gmra.mrb[0].mxu0 %v461
    %v535 = vpop.f32.mrb[0].mxu0
    %v536 = vadd.f32 %v375, %v535
    %v537 = vpop.f32.mrb[0].mxu0
    %538 = vmatprep.mubr.f32.mxu0 0.0
    %539 = vmatmul.mubr.f32.gmra.mrb[0].mxu0 %v463
    %v540 = vpop.f32.mrb[0].mxu0
    %v541 = vadd.f32 %v376, %v540
    %v542 = vpop.f32.mrb[0].mxu0
    %543 = vdwg.mxu0
    %v544 = vsel %vm377, %v334, 0
    %v546 = vsel %vm377, %v336, 0
    %v548 = vsel %vm377, %v348, 0
    %v550 = vsel %vm377, %v350, 0
    %552 = vmatprep.subr.mxu0 0.0
    %553 = vmatpush1.xpose.msra.mxu0 %v548
    %554 = vmatprep.subr.mxu0 0.0
    %555 = vmatpush1.xpose.msra.mxu0 %v550
    %556 = vmatprep.subr.mxu0 0.0
    %557 = vmatpush1.xpose.msra.mxu0 0.0
    %558 = vmatprep.subr.mxu0 0.0
    %559 = vmatpush1.xpose.msra.mxu0 0.0
    %560 = vmatprep.subr.mxu0 0.0
    %561 = vmatpush1.xpose.msra.mxu0 0.0
    %562 = vmatprep.subr.mxu0 0.0
    %563 = vmatpush1.xpose.msra.mxu0 0.0
    %564 = vmatprep.subr.mxu0 0.0
    %565 = vmatpush1.xpose.msra.mxu0 0.0
    %566 = vmatprep.subr.mxu0 0.0
    %567 = vmatpush1.xpose.msra.mxu0 0.0
    %568 = vmatprep.subr.mxu0 0.0
    %569 = vmatpush1.xpose.msra.mxu0 0.0
    %570 = vmatprep.subr.mxu0 0.0
    %571 = vmatpush1.xpose.msra.mxu0 0.0
    %572 = vmatprep.subr.mxu0 0.0
    %573 = vmatpush1.xpose.msra.mxu0 0.0
    %574 = vmatprep.subr.mxu0 0.0
    %575 = vmatpush1.xpose.msra.mxu0 0.0
    %576 = vmatprep.subr.mxu0 0.0
    %577 = vmatpush1.xpose.msra.mxu0 0.0
    %578 = vmatprep.subr.mxu0 0.0
    %579 = vmatpush1.xpose.msra.mxu0 0.0
    %580 = vmatprep.subr.mxu0 0.0
    %581 = vmatpush1.xpose.msra.mxu0 0.0
    %582 = vmatprep.subr.mxu0 0.0
    %583 = vmatpush1.xpose.msra.mxu0 0.0
    %584 = vmatprep.subr.mxu0 0.0
    %585 = vmatpush1.xpose.msra.mxu0 0.0
    %586 = vmatprep.subr.mxu0 0.0
    %587 = vmatpush1.xpose.msra.mxu0 0.0
    %588 = vmatprep.subr.mxu0 0.0
    %589 = vmatpush1.xpose.msra.mxu0 0.0
    %590 = vmatprep.subr.mxu0 0.0
    %591 = vmatpush1.xpose.msra.mxu0 0.0
    %592 = vmatprep.subr.mxu0 0.0
    %593 = vmatpush1.xpose.msra.mxu0 0.0
    %594 = vmatprep.subr.mxu0 0.0
    %595 = vmatpush1.xpose.msra.mxu0 0.0
    %596 = vmatprep.subr.mxu0 0.0
    %597 = vmatpush1.xpose.msra.mxu0 0.0
    %598 = vmatprep.subr.mxu0 0.0
    %599 = vmatpush1.xpose.msra.mxu0 0.0
    %600 = vmatprep.subr.mxu0 0.0
    %601 = vmatpush1.xpose.msra.mxu0 0.0
    %602 = vmatprep.subr.mxu0 0.0
    %603 = vmatpush1.xpose.msra.mxu0 0.0
    %604 = vmatprep.subr.mxu0 0.0
    %605 = vmatpush1.xpose.msra.mxu0 0.0
    %606 = vmatprep.subr.mxu0 0.0
    %607 = vmatpush1.xpose.msra.mxu0 0.0
    %608 = vmatprep.subr.mxu0 0.0
    %609 = vmatpush1.xpose.msra.mxu0 0.0
    %610 = vmatprep.subr.mxu0 0.0
    %611 = vmatpush1.xpose.msra.mxu0 0.0
    %612 = vmatprep.subr.mxu0 0.0
    %613 = vmatpush1.xpose.msra.mxu0 0.0
    %614 = vmatprep.subr.mxu0 0.0
    %615 = vmatpush1.xpose.msra.mxu0 0.0
    %616 = vmatprep.mubr.f32.mxu0 0.0
    %617 = vmatmul.mubr.f32.gmra.mrb[0].mxu0 %v544
    %v618 = vpop.f32.mrb[0].mxu0
    %v619 = vadd.f32 %v375, %v618
    %v620 = vpop.f32.mrb[0].mxu0
    %621 = vmatprep.mubr.f32.mxu0 0.0
    %622 = vmatmul.mubr.f32.gmra.mrb[0].mxu0 %v546
    %v623 = vpop.f32.mrb[0].mxu0
    %v624 = vadd.f32 %v376, %v623
    %v625 = vpop.f32.mrb[0].mxu0
    %626 = vdwg.mxu0
    %v627 = vsel %vm377, %v338, 0
    %v629 = vsel %vm377, %v340, 0
    %v631 = vsel %vm377, %v352, 0
    %v633 = vsel %vm377, %v354, 0
    %635 = vmatprep.subr.mxu0 0.0
    %636 = vmatpush1.xpose.msra.mxu0 %v631
    %637 = vmatprep.subr.mxu0 0.0
    %638 = vmatpush1.xpose.msra.mxu0 %v633
    %639 = vmatprep.subr.mxu0 0.0
    %640 = vmatpush1.xpose.msra.mxu0 0.0
    %641 = vmatprep.subr.mxu0 0.0
    %642 = vmatpush1.xpose.msra.mxu0 0.0
    %643 = vmatprep.subr.mxu0 0.0
    %644 = vmatpush1.xpose.msra.mxu0 0.0
    %645 = vmatprep.subr.mxu0 0.0
    %646 = vmatpush1.xpose.msra.mxu0 0.0
    %647 = vmatprep.subr.mxu0 0.0
    %648 = vmatpush1.xpose.msra.mxu0 0.0
    %649 = vmatprep.subr.mxu0 0.0
    %650 = vmatpush1.xpose.msra.mxu0 0.0
    %651 = vmatprep.subr.mxu0 0.0
    %652 = vmatpush1.xpose.msra.mxu0 0.0
    %653 = vmatprep.subr.mxu0 0.0
    %654 = vmatpush1.xpose.msra.mxu0 0.0
    %655 = vmatprep.subr.mxu0 0.0
    %656 = vmatpush1.xpose.msra.mxu0 0.0
    %657 = vmatprep.subr.mxu0 0.0
    %658 = vmatpush1.xpose.msra.mxu0 0.0
    %659 = vmatprep.subr.mxu0 0.0
    %660 = vmatpush1.xpose.msra.mxu0 0.0
    %661 = vmatprep.subr.mxu0 0.0
    %662 = vmatpush1.xpose.msra.mxu0 0.0
    %663 = vmatprep.subr.mxu0 0.0
    %664 = vmatpush1.xpose.msra.mxu0 0.0
    %665 = vmatprep.subr.mxu0 0.0
    %666 = vmatpush1.xpose.msra.mxu0 0.0
    %667 = vmatprep.subr.mxu0 0.0
    %668 = vmatpush1.xpose.msra.mxu0 0.0
    %669 = vmatprep.subr.mxu0 0.0
    %670 = vmatpush1.xpose.msra.mxu0 0.0
    %671 = vmatprep.subr.mxu0 0.0
    %672 = vmatpush1.xpose.msra.mxu0 0.0
    %673 = vmatprep.subr.mxu0 0.0
    %674 = vmatpush1.xpose.msra.mxu0 0.0
    %675 = vmatprep.subr.mxu0 0.0
    %676 = vmatpush1.xpose.msra.mxu0 0.0
    %677 = vmatprep.subr.mxu0 0.0
    %678 = vmatpush1.xpose.msra.mxu0 0.0
    %679 = vmatprep.subr.mxu0 0.0
    %680 = vmatpush1.xpose.msra.mxu0 0.0
    %681 = vmatprep.subr.mxu0 0.0
    %682 = vmatpush1.xpose.msra.mxu0 0.0
    %683 = vmatprep.subr.mxu0 0.0
    %684 = vmatpush1.xpose.msra.mxu0 0.0
    %685 = vmatprep.subr.mxu0 0.0
    %686 = vmatpush1.xpose.msra.mxu0 0.0
    %687 = vmatprep.subr.mxu0 0.0
    %688 = vmatpush1.xpose.msra.mxu0 0.0
    %689 = vmatprep.subr.mxu0 0.0
    %690 = vmatpush1.xpose.msra.mxu0 0.0
    %691 = vmatprep.subr.mxu0 0.0
    %692 = vmatpush1.xpose.msra.mxu0 0.0
    %693 = vmatprep.subr.mxu0 0.0
    %694 = vmatpush1.xpose.msra.mxu0 0.0
    %695 = vmatprep.subr.mxu0 0.0
    %696 = vmatpush1.xpose.msra.mxu0 0.0
    %697 = vmatprep.subr.mxu0 0.0
    %698 = vmatpush1.xpose.msra.mxu0 0.0
    %699 = vmatprep.mubr.f32.mxu0 0.0
    %700 = vmatmul.mubr.f32.gmra.mrb[0].mxu0 %v627
    %v701 = vpop.f32.mrb[0].mxu0
    %v702 = vadd.f32 %v375, %v701
    %v703 = vpop.f32.mrb[0].mxu0
    %704 = vmatprep.mubr.f32.mxu0 0.0
    %705 = vmatmul.mubr.f32.gmra.mrb[0].mxu0 %v629
    %v706 = vpop.f32.mrb[0].mxu0
    %v707 = vadd.f32 %v376, %v706
    %v708 = vpop.f32.mrb[0].mxu0
    %709 = vdwg.mxu0
    %vm710 = vcmask 130048
    %v711 = vsel %vm710, %v453, -inf
    %712 = vmax.xlane.f32.xlu0 %v711
    %v713 = vpop.xlane.xlu0 %712
    %v714 = vsel %vm710, %v458, -inf
    %715 = vmax.xlane.f32.xlu0 %v714
    %v716 = vpop.xlane.xlu0 %715
    %v717 = vsel %vm710, %v536, -inf
    %718 = vmax.xlane.f32.xlu0 %v717
    %v719 = vpop.xlane.xlu0 %718
    %v720 = vsel %vm710, %v541, -inf
    %721 = vmax.xlane.f32.xlu0 %v720
    %v722 = vpop.xlane.xlu0 %721
    %v723 = vsel %vm710, %v619, -inf
    %724 = vmax.xlane.f32.xlu0 %v723
    %v725 = vpop.xlane.xlu0 %724
    %v726 = vsel %vm710, %v624, -inf
    %727 = vmax.xlane.f32.xlu0 %v726
    %v728 = vpop.xlane.xlu0 %727
    %v729 = vsel %vm710, %v702, -inf
    %730 = vmax.xlane.f32.xlu0 %v729
    %v731 = vpop.xlane.xlu0 %730
    %v732 = vsel %vm710, %v707, -inf
    %733 = vmax.xlane.f32.xlu0 %v732
    %v734 = vpop.xlane.xlu0 %733
    %v735 = vsub.f32 %v453, %v713
    %v736 = vsub.f32 %v458, %v716
    %v737 = vsub.f32 %v536, %v719
    %v738 = vsub.f32 %v541, %v722
    %v739 = vsub.f32 %v619, %v725
    %v740 = vsub.f32 %v624, %v728
    %v741 = vsub.f32 %v702, %v731
    %v742 = vsub.f32 %v707, %v734
    %v743 = vmul.f32 %v735, 1.442695
    %v744 = vpow.pop %v743
    %v745 = vmul.f32 %v736, 1.442695
    %v746 = vpow.pop %v745
    %v747 = vmul.f32 %v737, 1.442695
    %v748 = vpow.pop %v747
    %v749 = vmul.f32 %v738, 1.442695
    %v750 = vpow.pop %v749
    %v751 = vmul.f32 %v739, 1.442695
    %v752 = vpow.pop %v751
    %v753 = vmul.f32 %v740, 1.442695
    %v754 = vpow.pop %v753
    %v755 = vmul.f32 %v741, 1.442695
    %v756 = vpow.pop %v755
    %v757 = vmul.f32 %v742, 1.442695
    %v758 = vpow.pop %v757
    %v759 = vsel %vm710, %v744, 0.0
    %760 = vadd.xlane.f32.xlu0 %v759
    %v761 = vpop.xlane.xlu0 %760
    %v762 = vsel %vm710, %v746, 0.0
    %763 = vadd.xlane.f32.xlu0 %v762
    %v764 = vpop.xlane.xlu0 %763
    %v765 = vsel %vm710, %v748, 0.0
    %766 = vadd.xlane.f32.xlu0 %v765
    %v767 = vpop.xlane.xlu0 %766
    %v768 = vsel %vm710, %v750, 0.0
    %769 = vadd.xlane.f32.xlu0 %v768
    %v770 = vpop.xlane.xlu0 %769
    %v771 = vsel %vm710, %v752, 0.0
    %772 = vadd.xlane.f32.xlu0 %v771
    %v773 = vpop.xlane.xlu0 %772
    %v774 = vsel %vm710, %v754, 0.0
    %775 = vadd.xlane.f32.xlu0 %v774
    %v776 = vpop.xlane.xlu0 %775
    %v777 = vsel %vm710, %v756, 0.0
    %778 = vadd.xlane.f32.xlu0 %v777
    %v779 = vpop.xlane.xlu0 %778
    %v780 = vsel %vm710, %v758, 0.0
    %781 = vadd.xlane.f32.xlu0 %v780
    %v782 = vpop.xlane.xlu0 %781
    %v783 = vrcp.pop %v761
    %v784 = vrcp.pop %v764
    %v785 = vrcp.pop %v767
    %v786 = vrcp.pop %v770
    %v787 = vrcp.pop %v773
    %v788 = vrcp.pop %v776
    %v789 = vrcp.pop %v779
    %v790 = vrcp.pop %v782
    %v791 = vmul.f32 %v744, %v783
    %v792 = vmul.f32 %v746, %v784
    %v793 = vmul.f32 %v748, %v785
    %v794 = vmul.f32 %v750, %v786
    %v795 = vmul.f32 %v752, %v787
    %v796 = vmul.f32 %v754, %v788
    %v797 = vmul.f32 %v756, %v789
    %v798 = vmul.f32 %v758, %v790
    %v800 = vsel %vm710, %v791, 0
    %v803 = vsel %vm710, %v792, 0
    %805 = vmatprep.subr.mxu0 0.0
    %806 = vmatpush1.msra.mxu0 %v319
    %807 = vmatprep.subr.mxu0 0.0
    %808 = vmatpush1.msra.mxu0 %v324
    %809 = vmatprep.subr.mxu0 0.0
    %810 = vmatpush1.msra.mxu0 0.0
    %811 = vmatprep.subr.mxu0 0.0
    %812 = vmatpush1.msra.mxu0 0.0
    %813 = vmatprep.subr.mxu0 0.0
    %814 = vmatpush1.msra.mxu0 0.0
    %815 = vmatprep.subr.mxu0 0.0
    %816 = vmatpush1.msra.mxu0 0.0
    %817 = vmatprep.subr.mxu0 0.0
    %818 = vmatpush1.msra.mxu0 0.0
    %819 = vmatprep.subr.mxu0 0.0
    %820 = vmatpush1.msra.mxu0 0.0
    %821 = vmatprep.subr.mxu0 0.0
    %822 = vmatpush1.msra.mxu0 0.0
    %823 = vmatprep.subr.mxu0 0.0
    %824 = vmatpush1.msra.mxu0 0.0
    %825 = vmatprep.subr.mxu0 0.0
    %826 = vmatpush1.msra.mxu0 0.0
    %827 = vmatprep.subr.mxu0 0.0
    %828 = vmatpush1.msra.mxu0 0.0
    %829 = vmatprep.subr.mxu0 0.0
    %830 = vmatpush1.msra.mxu0 0.0
    %831 = vmatprep.subr.mxu0 0.0
    %832 = vmatpush1.msra.mxu0 0.0
    %833 = vmatprep.subr.mxu0 0.0
    %834 = vmatpush1.msra.mxu0 0.0
    %835 = vmatprep.subr.mxu0 0.0
    %836 = vmatpush1.msra.mxu0 0.0
    %837 = vmatprep.subr.mxu0 0.0
    %838 = vmatpush1.msra.mxu0 0.0
    %839 = vmatprep.subr.mxu0 0.0
    %840 = vmatpush1.msra.mxu0 0.0
    %841 = vmatprep.subr.mxu0 0.0
    %842 = vmatpush1.msra.mxu0 0.0
    %843 = vmatprep.subr.mxu0 0.0
    %844 = vmatpush1.msra.mxu0 0.0
    %845 = vmatprep.subr.mxu0 0.0
    %846 = vmatpush1.msra.mxu0 0.0
    %847 = vmatprep.subr.mxu0 0.0
    %848 = vmatpush1.msra.mxu0 0.0
    %849 = vmatprep.subr.mxu0 0.0
    %850 = vmatpush1.msra.mxu0 0.0
    %851 = vmatprep.subr.mxu0 0.0
    %852 = vmatpush1.msra.mxu0 0.0
    %853 = vmatprep.subr.mxu0 0.0
    %854 = vmatpush1.msra.mxu0 0.0
    %855 = vmatprep.subr.mxu0 0.0
    %856 = vmatpush1.msra.mxu0 0.0
    %857 = vmatprep.subr.mxu0 0.0
    %858 = vmatpush1.msra.mxu0 0.0
    %859 = vmatprep.subr.mxu0 0.0
    %860 = vmatpush1.msra.mxu0 0.0
    %861 = vmatprep.subr.mxu0 0.0
    %862 = vmatpush1.msra.mxu0 0.0
    %863 = vmatprep.subr.mxu0 0.0
    %864 = vmatpush1.msra.mxu0 0.0
    %865 = vmatprep.subr.mxu0 0.0
    %866 = vmatpush1.msra.mxu0 0.0
    %867 = vmatprep.subr.mxu0 0.0
    %868 = vmatpush1.msra.mxu0 0.0
    %869 = vmatprep.mubr.f32.mxu0 0.0
    %870 = vmatmul.mubr.f32.gmra.mrb[0].mxu0 %v800
    %v871 = vpop.f32.mrb[0].mxu0
    %v872 = vadd.f32 0.0, %v871
    %v873 = vpop.f32.mrb[0].mxu0
    %874 = vmatprep.mubr.f32.mxu0 0.0
    %875 = vmatmul.mubr.f32.gmra.mrb[0].mxu0 %v803
    %v876 = vpop.f32.mrb[0].mxu0
    %v877 = vadd.f32 0.0, %v876
    %v878 = vpop.f32.mrb[0].mxu0
    %879 = vdwg.mxu0
    %v881 = vsel %vm710, %v793, 0
    %v884 = vsel %vm710, %v794, 0
    %886 = vmatprep.subr.mxu0 0.0
    %887 = vmatpush1.msra.mxu0 %v358
    %888 = vmatprep.subr.mxu0 0.0
    %889 = vmatpush1.msra.mxu0 %v360
    %890 = vmatprep.subr.mxu0 0.0
    %891 = vmatpush1.msra.mxu0 0.0
    %892 = vmatprep.subr.mxu0 0.0
    %893 = vmatpush1.msra.mxu0 0.0
    %894 = vmatprep.subr.mxu0 0.0
    %895 = vmatpush1.msra.mxu0 0.0
    %896 = vmatprep.subr.mxu0 0.0
    %897 = vmatpush1.msra.mxu0 0.0
    %898 = vmatprep.subr.mxu0 0.0
    %899 = vmatpush1.msra.mxu0 0.0
    %900 = vmatprep.subr.mxu0 0.0
    %901 = vmatpush1.msra.mxu0 0.0
    %902 = vmatprep.subr.mxu0 0.0
    %903 = vmatpush1.msra.mxu0 0.0
    %904 = vmatprep.subr.mxu0 0.0
    %905 = vmatpush1.msra.mxu0 0.0
    %906 = vmatprep.subr.mxu0 0.0
    %907 = vmatpush1.msra.mxu0 0.0
    %908 = vmatprep.subr.mxu0 0.0
    %909 = vmatpush1.msra.mxu0 0.0
    %910 = vmatprep.subr.mxu0 0.0
    %911 = vmatpush1.msra.mxu0 0.0
    %912 = vmatprep.subr.mxu0 0.0
    %913 = vmatpush1.msra.mxu0 0.0
    %914 = vmatprep.subr.mxu0 0.0
    %915 = vmatpush1.msra.mxu0 0.0
    %916 = vmatprep.subr.mxu0 0.0
    %917 = vmatpush1.msra.mxu0 0.0
    %918 = vmatprep.subr.mxu0 0.0
    %919 = vmatpush1.msra.mxu0 0.0
    %920 = vmatprep.subr.mxu0 0.0
    %921 = vmatpush1.msra.mxu0 0.0
    %922 = vmatprep.subr.mxu0 0.0
    %923 = vmatpush1.msra.mxu0 0.0
    %924 = vmatprep.subr.mxu0 0.0
    %925 = vmatpush1.msra.mxu0 0.0
    %926 = vmatprep.subr.mxu0 0.0
    %927 = vmatpush1.msra.mxu0 0.0
    %928 = vmatprep.subr.mxu0 0.0
    %929 = vmatpush1.msra.mxu0 0.0
    %930 = vmatprep.subr.mxu0 0.0
    %931 = vmatpush1.msra.mxu0 0.0
    %932 = vmatprep.subr.mxu0 0.0
    %933 = vmatpush1.msra.mxu0 0.0
    %934 = vmatprep.subr.mxu0 0.0
    %935 = vmatpush1.msra.mxu0 0.0
    %936 = vmatprep.subr.mxu0 0.0
    %937 = vmatpush1.msra.mxu0 0.0
    %938 = vmatprep.subr.mxu0 0.0
    %939 = vmatpush1.msra.mxu0 0.0
    %940 = vmatprep.subr.mxu0 0.0
    %941 = vmatpush1.msra.mxu0 0.0
    %942 = vmatprep.subr.mxu0 0.0
    %943 = vmatpush1.msra.mxu0 0.0
    %944 = vmatprep.subr.mxu0 0.0
    %945 = vmatpush1.msra.mxu0 0.0
    %946 = vmatprep.subr.mxu0 0.0
    %947 = vmatpush1.msra.mxu0 0.0
    %948 = vmatprep.subr.mxu0 0.0
    %949 = vmatpush1.msra.mxu0 0.0
    %950 = vmatprep.mubr.f32.mxu0 0.0
    %951 = vmatmul.mubr.f32.gmra.mrb[0].mxu0 %v881
    %v952 = vpop.f32.mrb[0].mxu0
    %v953 = vadd.f32 0.0, %v952
    %v954 = vpop.f32.mrb[0].mxu0
    %955 = vmatprep.mubr.f32.mxu0 0.0
    %956 = vmatmul.mubr.f32.gmra.mrb[0].mxu0 %v884
    %v957 = vpop.f32.mrb[0].mxu0
    %v958 = vadd.f32 0.0, %v957
    %v959 = vpop.f32.mrb[0].mxu0
    %960 = vdwg.mxu0
    %v962 = vsel %vm710, %v795, 0
    %v965 = vsel %vm710, %v796, 0
    %967 = vmatprep.subr.mxu0 0.0
    %968 = vmatpush1.msra.mxu0 %v364
    %969 = vmatprep.subr.mxu0 0.0
    %970 = vmatpush1.msra.mxu0 %v366
    %971 = vmatprep.subr.mxu0 0.0
    %972 = vmatpush1.msra.mxu0 0.0
    %973 = vmatprep.subr.mxu0 0.0
    %974 = vmatpush1.msra.mxu0 0.0
    %975 = vmatprep.subr.mxu0 0.0
    %976 = vmatpush1.msra.mxu0 0.0
    %977 = vmatprep.subr.mxu0 0.0
    %978 = vmatpush1.msra.mxu0 0.0
    %979 = vmatprep.subr.mxu0 0.0
    %980 = vmatpush1.msra.mxu0 0.0
    %981 = vmatprep.subr.mxu0 0.0
    %982 = vmatpush1.msra.mxu0 0.0
    %983 = vmatprep.subr.mxu0 0.0
    %984 = vmatpush1.msra.mxu0 0.0
    %985 = vmatprep.subr.mxu0 0.0
    %986 = vmatpush1.msra.mxu0 0.0
    %987 = vmatprep.subr.mxu0 0.0
    %988 = vmatpush1.msra.mxu0 0.0
    %989 = vmatprep.subr.mxu0 0.0
    %990 = vmatpush1.msra.mxu0 0.0
    %991 = vmatprep.subr.mxu0 0.0
    %992 = vmatpush1.msra.mxu0 0.0
    %993 = vmatprep.subr.mxu0 0.0
    %994 = vmatpush1.msra.mxu0 0.0
    %995 = vmatprep.subr.mxu0 0.0
    %996 = vmatpush1.msra.mxu0 0.0
    %997 = vmatprep.subr.mxu0 0.0
    %998 = vmatpush1.msra.mxu0 0.0
    %999 = vmatprep.subr.mxu0 0.0
    %1000 = vmatpush1.msra.mxu0 0.0
    %1001 = vmatprep.subr.mxu0 0.0
    %1002 = vmatpush1.msra.mxu0 0.0
    %1003 = vmatprep.subr.mxu0 0.0
    %1004 = vmatpush1.msra.mxu0 0.0
    %1005 = vmatprep.subr.mxu0 0.0
    %1006 = vmatpush1.msra.mxu0 0.0
    %1007 = vmatprep.subr.mxu0 0.0
    %1008 = vmatpush1.msra.mxu0 0.0
    %1009 = vmatprep.subr.mxu0 0.0
    %1010 = vmatpush1.msra.mxu0 0.0
    %1011 = vmatprep.subr.mxu0 0.0
    %1012 = vmatpush1.msra.mxu0 0.0
    %1013 = vmatprep.subr.mxu0 0.0
    %1014 = vmatpush1.msra.mxu0 0.0
    %1015 = vmatprep.subr.mxu0 0.0
    %1016 = vmatpush1.msra.mxu0 0.0
    %1017 = vmatprep.subr.mxu0 0.0
    %1018 = vmatpush1.msra.mxu0 0.0
    %1019 = vmatprep.subr.mxu0 0.0
    %1020 = vmatpush1.msra.mxu0 0.0
    %1021 = vmatprep.subr.mxu0 0.0
    %1022 = vmatpush1.msra.mxu0 0.0
    %1023 = vmatprep.subr.mxu0 0.0
    %1024 = vmatpush1.msra.mxu0 0.0
    %1025 = vmatprep.subr.mxu0 0.0
    %1026 = vmatpush1.msra.mxu0 0.0
    %1027 = vmatprep.subr.mxu0 0.0
    %1028 = vmatpush1.msra.mxu0 0.0
    %1029 = vmatprep.subr.mxu0 0.0
    %1030 = vmatpush1.msra.mxu0 0.0
    %1031 = vmatprep.mubr.f32.mxu0 0.0
    %1032 = vmatmul.mubr.f32.gmra.mrb[0].mxu0 %v962
    %v1033 = vpop.f32.mrb[0].mxu0
    %v1034 = vadd.f32 0.0, %v1033
    %v1035 = vpop.f32.mrb[0].mxu0
    %1036 = vmatprep.mubr.f32.mxu0 0.0
    %1037 = vmatmul.mubr.f32.gmra.mrb[0].mxu0 %v965
    %v1038 = vpop.f32.mrb[0].mxu0
    %v1039 = vadd.f32 0.0, %v1038
    %v1040 = vpop.f32.mrb[0].mxu0
    %1041 = vdwg.mxu0
    %v1043 = vsel %vm710, %v797, 0
    %v1046 = vsel %vm710, %v798, 0
    %1048 = vmatprep.subr.mxu0 0.0
    %1049 = vmatpush1.msra.mxu0 %v370
    %1050 = vmatprep.subr.mxu0 0.0
    %1051 = vmatpush1.msra.mxu0 %v372
    %1052 = vmatprep.subr.mxu0 0.0
    %1053 = vmatpush1.msra.mxu0 0.0
    %1054 = vmatprep.subr.mxu0 0.0
    %1055 = vmatpush1.msra.mxu0 0.0
    %1056 = vmatprep.subr.mxu0 0.0
    %1057 = vmatpush1.msra.mxu0 0.0
    %1058 = vmatprep.subr.mxu0 0.0
    %1059 = vmatpush1.msra.mxu0 0.0
    %1060 = vmatprep.subr.mxu0 0.0
    %1061 = vmatpush1.msra.mxu0 0.0
    %1062 = vmatprep.subr.mxu0 0.0
    %1063 = vmatpush1.msra.mxu0 0.0
    %1064 = vmatprep.subr.mxu0 0.0
    %1065 = vmatpush1.msra.mxu0 0.0
    %1066 = vmatprep.subr.mxu0 0.0
    %1067 = vmatpush1.msra.mxu0 0.0
    %1068 = vmatprep.subr.mxu0 0.0
    %1069 = vmatpush1.msra.mxu0 0.0
    %1070 = vmatprep.subr.mxu0 0.0
    %1071 = vmatpush1.msra.mxu0 0.0
    %1072 = vmatprep.subr.mxu0 0.0
    %1073 = vmatpush1.msra.mxu0 0.0
    %1074 = vmatprep.subr.mxu0 0.0
    %1075 = vmatpush1.msra.mxu0 0.0
    %1076 = vmatprep.subr.mxu0 0.0
    %1077 = vmatpush1.msra.mxu0 0.0
    %1078 = vmatprep.subr.mxu0 0.0
    %1079 = vmatpush1.msra.mxu0 0.0
    %1080 = vmatprep.subr.mxu0 0.0
    %1081 = vmatpush1.msra.mxu0 0.0
    %1082 = vmatprep.subr.mxu0 0.0
    %1083 = vmatpush1.msra.mxu0 0.0
    %1084 = vmatprep.subr.mxu0 0.0
    %1085 = vmatpush1.msra.mxu0 0.0
    %1086 = vmatprep.subr.mxu0 0.0
    %1087 = vmatpush1.msra.mxu0 0.0
    %1088 = vmatprep.subr.mxu0 0.0
    %1089 = vmatpush1.msra.mxu0 0.0
    %1090 = vmatprep.subr.mxu0 0.0
    %1091 = vmatpush1.msra.mxu0 0.0
    %1092 = vmatprep.subr.mxu0 0.0
    %1093 = vmatpush1.msra.mxu0 0.0
    %1094 = vmatprep.subr.mxu0 0.0
    %1095 = vmatpush1.msra.mxu0 0.0
    %1096 = vmatprep.subr.mxu0 0.0
    %1097 = vmatpush1.msra.mxu0 0.0
    %1098 = vmatprep.subr.mxu0 0.0
    %1099 = vmatpush1.msra.mxu0 0.0
    %1100 = vmatprep.subr.mxu0 0.0
    %1101 = vmatpush1.msra.mxu0 0.0
    %1102 = vmatprep.subr.mxu0 0.0
    %1103 = vmatpush1.msra.mxu0 0.0
    %1104 = vmatprep.subr.mxu0 0.0
    %1105 = vmatpush1.msra.mxu0 0.0
    %1106 = vmatprep.subr.mxu0 0.0
    %1107 = vmatpush1.msra.mxu0 0.0
    %1108 = vmatprep.subr.mxu0 0.0
    %1109 = vmatpush1.msra.mxu0 0.0
    %1110 = vmatprep.subr.mxu0 0.0
    %1111 = vmatpush1.msra.mxu0 0.0
    %1112 = vmatprep.mubr.f32.mxu0 0.0
    %1113 = vmatmul.mubr.f32.gmra.mrb[0].mxu0 %v1043
    %v1114 = vpop.f32.mrb[0].mxu0
    %v1115 = vadd.f32 0.0, %v1114
    %v1116 = vpop.f32.mrb[0].mxu0
    %1117 = vmatprep.mubr.f32.mxu0 0.0
    %1118 = vmatmul.mubr.f32.gmra.mrb[0].mxu0 %v1046
    %v1119 = vpop.f32.mrb[0].mxu0
    %v1120 = vadd.f32 0.0, %v1119
    %v1121 = vpop.f32.mrb[0].mxu0
    %1122 = vdwg.mxu0
    %v1123 = vld [vmem:[%s5] sm:$0xff]
    %v1124 = vld [vmem:[%s5 + $0x8] sm:$0xff]
    %v1125 = vld [vmem:[%s5 + $0x10] sm:$0xff]
    %v1126 = vld [vmem:[%s5 + $0x18] sm:$0xff]
    %v1128 = vsel %vm377, %v872, 0
    %v1131 = vsel %vm377, %v877, 0
    %1133 = vmatprep.subr.mxu0 0.0
    %1134 = vmatpush1.msra.mxu0 %v1123
    %1135 = vmatprep.subr.mxu0 0.0
    %1136 = vmatpush1.msra.mxu0 0.0
    %1137 = vmatprep.subr.mxu0 0.0
    %1138 = vmatpush1.msra.mxu0 0.0
    %1139 = vmatprep.subr.mxu0 0.0
    %1140 = vmatpush1.msra.mxu0 0.0
    %1141 = vmatprep.subr.mxu0 0.0
    %1142 = vmatpush1.msra.mxu0 0.0
    %1143 = vmatprep.subr.mxu0 0.0
    %1144 = vmatpush1.msra.mxu0 0.0
    %1145 = vmatprep.subr.mxu0 0.0
    %1146 = vmatpush1.msra.mxu0 0.0
    %1147 = vmatprep.subr.mxu0 0.0
    %1148 = vmatpush1.msra.mxu0 0.0
    %1149 = vmatprep.subr.mxu0 0.0
    %1150 = vmatpush1.msra.mxu0 0.0
    %1151 = vmatprep.subr.mxu0 0.0
    %1152 = vmatpush1.msra.mxu0 0.0
    %1153 = vmatprep.subr.mxu0 0.0
    %1154 = vmatpush1.msra.mxu0 0.0
    %1155 = vmatprep.subr.mxu0 0.0
    %1156 = vmatpush1.msra.mxu0 0.0
    %1157 = vmatprep.subr.mxu0 0.0
    %1158 = vmatpush1.msra.mxu0 0.0
    %1159 = vmatprep.subr.mxu0 0.0
    %1160 = vmatpush1.msra.mxu0 0.0
    %1161 = vmatprep.subr.mxu0 0.0
    %1162 = vmatpush1.msra.mxu0 0.0
    %1163 = vmatprep.subr.mxu0 0.0
    %1164 = vmatpush1.msra.mxu0 0.0
    %1165 = vmatprep.subr.mxu0 0.0
    %1166 = vmatpush1.msra.mxu0 0.0
    %1167 = vmatprep.subr.mxu0 0.0
    %1168 = vmatpush1.msra.mxu0 0.0
    %1169 = vmatprep.subr.mxu0 0.0
    %1170 = vmatpush1.msra.mxu0 0.0
    %1171 = vmatprep.subr.mxu0 0.0
    %1172 = vmatpush1.msra.mxu0 0.0
    %1173 = vmatprep.subr.mxu0 0.0
    %1174 = vmatpush1.msra.mxu0 0.0
    %1175 = vmatprep.subr.mxu0 0.0
    %1176 = vmatpush1.msra.mxu0 0.0
    %1177 = vmatprep.subr.mxu0 0.0
    %1178 = vmatpush1.msra.mxu0 0.0
    %1179 = vmatprep.subr.mxu0 0.0
    %1180 = vmatpush1.msra.mxu0 0.0
    %1181 = vmatprep.subr.mxu0 0.0
    %1182 = vmatpush1.msra.mxu0 0.0
    %1183 = vmatprep.subr.mxu0 0.0
    %1184 = vmatpush1.msra.mxu0 0.0
    %1185 = vmatprep.subr.mxu0 0.0
    %1186 = vmatpush1.msra.mxu0 0.0
    %1187 = vmatprep.subr.mxu0 0.0
    %1188 = vmatpush1.msra.mxu0 0.0
    %1189 = vmatprep.subr.mxu0 0.0
    %1190 = vmatpush1.msra.mxu0 0.0
    %1191 = vmatprep.subr.mxu0 0.0
    %1192 = vmatpush1.msra.mxu0 0.0
    %1193 = vmatprep.subr.mxu0 0.0
    %1194 = vmatpush1.msra.mxu0 0.0
    %1195 = vmatprep.subr.mxu0 0.0
    %1196 = vmatpush1.msra.mxu0 0.0
    %1197 = vmatprep.mubr.f32.mxu0 0.0
    %1198 = vmatmul.mubr.f32.gmra.mrb[0].mxu0 %v1128
    %v1199 = vpop.f32.mrb[0].mxu0
    %v1200 = vadd.f32 0.0, %v1199
    %v1201 = vpop.f32.mrb[0].mxu0
    %1202 = vmatprep.mubr.f32.mxu0 0.0
    %1203 = vmatmul.mubr.f32.gmra.mrb[0].mxu0 %v1131
    %v1204 = vpop.f32.mrb[0].mxu0
    %v1205 = vadd.f32 0.0, %v1204
    %v1206 = vpop.f32.mrb[0].mxu0
    %1207 = vdwg.mxu0
    %v1209 = vsel %vm377, %v953, 0
    %v1212 = vsel %vm377, %v958, 0
    %1214 = vmatprep.subr.mxu0 0.0
    %1215 = vmatpush1.msra.mxu0 %v1124
    %1216 = vmatprep.subr.mxu0 0.0
    %1217 = vmatpush1.msra.mxu0 0.0
    %1218 = vmatprep.subr.mxu0 0.0
    %1219 = vmatpush1.msra.mxu0 0.0
    %1220 = vmatprep.subr.mxu0 0.0
    %1221 = vmatpush1.msra.mxu0 0.0
    %1222 = vmatprep.subr.mxu0 0.0
    %1223 = vmatpush1.msra.mxu0 0.0
    %1224 = vmatprep.subr.mxu0 0.0
    %1225 = vmatpush1.msra.mxu0 0.0
    %1226 = vmatprep.subr.mxu0 0.0
    %1227 = vmatpush1.msra.mxu0 0.0
    %1228 = vmatprep.subr.mxu0 0.0
    %1229 = vmatpush1.msra.mxu0 0.0
    %1230 = vmatprep.subr.mxu0 0.0
    %1231 = vmatpush1.msra.mxu0 0.0
    %1232 = vmatprep.subr.mxu0 0.0
    %1233 = vmatpush1.msra.mxu0 0.0
    %1234 = vmatprep.subr.mxu0 0.0
    %1235 = vmatpush1.msra.mxu0 0.0
    %1236 = vmatprep.subr.mxu0 0.0
    %1237 = vmatpush1.msra.mxu0 0.0
    %1238 = vmatprep.subr.mxu0 0.0
    %1239 = vmatpush1.msra.mxu0 0.0
    %1240 = vmatprep.subr.mxu0 0.0
    %1241 = vmatpush1.msra.mxu0 0.0
    %1242 = vmatprep.subr.mxu0 0.0
    %1243 = vmatpush1.msra.mxu0 0.0
    %1244 = vmatprep.subr.mxu0 0.0
    %1245 = vmatpush1.msra.mxu0 0.0
    %1246 = vmatprep.subr.mxu0 0.0
    %1247 = vmatpush1.msra.mxu0 0.0
    %1248 = vmatprep.subr.mxu0 0.0
    %1249 = vmatpush1.msra.mxu0 0.0
    %1250 = vmatprep.subr.mxu0 0.0
    %1251 = vmatpush1.msra.mxu0 0.0
    %1252 = vmatprep.subr.mxu0 0.0
    %1253 = vmatpush1.msra.mxu0 0.0
    %1254 = vmatprep.subr.mxu0 0.0
    %1255 = vmatpush1.msra.mxu0 0.0
    %1256 = vmatprep.subr.mxu0 0.0
    %1257 = vmatpush1.msra.mxu0 0.0
    %1258 = vmatprep.subr.mxu0 0.0
    %1259 = vmatpush1.msra.mxu0 0.0
    %1260 = vmatprep.subr.mxu0 0.0
    %1261 = vmatpush1.msra.mxu0 0.0
    %1262 = vmatprep.subr.mxu0 0.0
    %1263 = vmatpush1.msra.mxu0 0.0
    %1264 = vmatprep.subr.mxu0 0.0
    %1265 = vmatpush1.msra.mxu0 0.0
    %1266 = vmatprep.subr.mxu0 0.0
    %1267 = vmatpush1.msra.mxu0 0.0
    %1268 = vmatprep.subr.mxu0 0.0
    %1269 = vmatpush1.msra.mxu0 0.0
    %1270 = vmatprep.subr.mxu0 0.0
    %1271 = vmatpush1.msra.mxu0 0.0
    %1272 = vmatprep.subr.mxu0 0.0
    %1273 = vmatpush1.msra.mxu0 0.0
    %1274 = vmatprep.subr.mxu0 0.0
    %1275 = vmatpush1.msra.mxu0 0.0
    %1276 = vmatprep.subr.mxu0 0.0
    %1277 = vmatpush1.msra.mxu0 0.0
    %1278 = vmatprep.mubr.f32.mxu0 0.0
    %1279 = vmatmul.mubr.f32.gmra.mrb[0].mxu0 %v1209
    %v1280 = vpop.f32.mrb[0].mxu0
    %v1281 = vadd.f32 0.0, %v1280
    %v1282 = vpop.f32.mrb[0].mxu0
    %1283 = vmatprep.mubr.f32.mxu0 0.0
    %1284 = vmatmul.mubr.f32.gmra.mrb[0].mxu0 %v1212
    %v1285 = vpop.f32.mrb[0].mxu0
    %v1286 = vadd.f32 0.0, %v1285
    %v1287 = vpop.f32.mrb[0].mxu0
    %1288 = vdwg.mxu0
    %v1290 = vsel %vm377, %v1034, 0
    %v1293 = vsel %vm377, %v1039, 0
    %1295 = vmatprep.subr.mxu0 0.0
    %1296 = vmatpush1.msra.mxu0 %v1125
    %1297 = vmatprep.subr.mxu0 0.0
    %1298 = vmatpush1.msra.mxu0 0.0
    %1299 = vmatprep.subr.mxu0 0.0
    %1300 = vmatpush1.msra.mxu0 0.0
    %1301 = vmatprep.subr.mxu0 0.0
    %1302 = vmatpush1.msra.mxu0 0.0
    %1303 = vmatprep.subr.mxu0 0.0
    %1304 = vmatpush1.msra.mxu0 0.0
    %1305 = vmatprep.subr.mxu0 0.0
    %1306 = vmatpush1.msra.mxu0 0.0
    %1307 = vmatprep.subr.mxu0 0.0
    %1308 = vmatpush1.msra.mxu0 0.0
    %1309 = vmatprep.subr.mxu0 0.0
    %1310 = vmatpush1.msra.mxu0 0.0
    %1311 = vmatprep.subr.mxu0 0.0
    %1312 = vmatpush1.msra.mxu0 0.0
    %1313 = vmatprep.subr.mxu0 0.0
    %1314 = vmatpush1.msra.mxu0 0.0
    %1315 = vmatprep.subr.mxu0 0.0
    %1316 = vmatpush1.msra.mxu0 0.0
    %1317 = vmatprep.subr.mxu0 0.0
    %1318 = vmatpush1.msra.mxu0 0.0
    %1319 = vmatprep.subr.mxu0 0.0
    %1320 = vmatpush1.msra.mxu0 0.0
    %1321 = vmatprep.subr.mxu0 0.0
    %1322 = vmatpush1.msra.mxu0 0.0
    %1323 = vmatprep.subr.mxu0 0.0
    %1324 = vmatpush1.msra.mxu0 0.0
    %1325 = vmatprep.subr.mxu0 0.0
    %1326 = vmatpush1.msra.mxu0 0.0
    %1327 = vmatprep.subr.mxu0 0.0
    %1328 = vmatpush1.msra.mxu0 0.0
    %1329 = vmatprep.subr.mxu0 0.0
    %1330 = vmatpush1.msra.mxu0 0.0
    %1331 = vmatprep.subr.mxu0 0.0
    %1332 = vmatpush1.msra.mxu0 0.0
    %1333 = vmatprep.subr.mxu0 0.0
    %1334 = vmatpush1.msra.mxu0 0.0
    %1335 = vmatprep.subr.mxu0 0.0
    %1336 = vmatpush1.msra.mxu0 0.0
    %1337 = vmatprep.subr.mxu0 0.0
    %1338 = vmatpush1.msra.mxu0 0.0
    %1339 = vmatprep.subr.mxu0 0.0
    %1340 = vmatpush1.msra.mxu0 0.0
    %1341 = vmatprep.subr.mxu0 0.0
    %1342 = vmatpush1.msra.mxu0 0.0
    %1343 = vmatprep.subr.mxu0 0.0
    %1344 = vmatpush1.msra.mxu0 0.0
    %1345 = vmatprep.subr.mxu0 0.0
    %1346 = vmatpush1.msra.mxu0 0.0
    %1347 = vmatprep.subr.mxu0 0.0
    %1348 = vmatpush1.msra.mxu0 0.0
    %1349 = vmatprep.subr.mxu0 0.0
    %1350 = vmatpush1.msra.mxu0 0.0
    %1351 = vmatprep.subr.mxu0 0.0
    %1352 = vmatpush1.msra.mxu0 0.0
    %1353 = vmatprep.subr.mxu0 0.0
    %1354 = vmatpush1.msra.mxu0 0.0
    %1355 = vmatprep.subr.mxu0 0.0
    %1356 = vmatpush1.msra.mxu0 0.0
    %1357 = vmatprep.subr.mxu0 0.0
    %1358 = vmatpush1.msra.mxu0 0.0
    %1359 = vmatprep.mubr.f32.mxu0 0.0
    %1360 = vmatmul.mubr.f32.gmra.mrb[0].mxu0 %v1290
    %v1361 = vpop.f32.mrb[0].mxu0
    %v1362 = vadd.f32 0.0, %v1361
    %v1363 = vpop.f32.mrb[0].mxu0
    %1364 = vmatprep.mubr.f32.mxu0 0.0
    %1365 = vmatmul.mubr.f32.gmra.mrb[0].mxu0 %v1293
    %v1366 = vpop.f32.mrb[0].mxu0
    %v1367 = vadd.f32 0.0, %v1366
    %v1368 = vpop.f32.mrb[0].mxu0
    %1369 = vdwg.mxu0
    %v1371 = vsel %vm377, %v1115, 0
    %v1374 = vsel %vm377, %v1120, 0
    %1376 = vmatprep.subr.mxu0 0.0
    %1377 = vmatpush1.msra.mxu0 %v1126
    %1378 = vmatprep.subr.mxu0 0.0
    %1379 = vmatpush1.msra.mxu0 0.0
    %1380 = vmatprep.subr.mxu0 0.0
    %1381 = vmatpush1.msra.mxu0 0.0
    %1382 = vmatprep.subr.mxu0 0.0
    %1383 = vmatpush1.msra.mxu0 0.0
    %1384 = vmatprep.subr.mxu0 0.0
    %1385 = vmatpush1.msra.mxu0 0.0
    %1386 = vmatprep.subr.mxu0 0.0
    %1387 = vmatpush1.msra.mxu0 0.0
    %1388 = vmatprep.subr.mxu0 0.0
    %1389 = vmatpush1.msra.mxu0 0.0
    %1390 = vmatprep.subr.mxu0 0.0
    %1391 = vmatpush1.msra.mxu0 0.0
    %1392 = vmatprep.subr.mxu0 0.0
    %1393 = vmatpush1.msra.mxu0 0.0
    %1394 = vmatprep.subr.mxu0 0.0
    %1395 = vmatpush1.msra.mxu0 0.0
    %1396 = vmatprep.subr.mxu0 0.0
    %1397 = vmatpush1.msra.mxu0 0.0
    %1398 = vmatprep.subr.mxu0 0.0
    %1399 = vmatpush1.msra.mxu0 0.0
    %1400 = vmatprep.subr.mxu0 0.0
    %1401 = vmatpush1.msra.mxu0 0.0
    %1402 = vmatprep.subr.mxu0 0.0
    %1403 = vmatpush1.msra.mxu0 0.0
    %1404 = vmatprep.subr.mxu0 0.0
    %1405 = vmatpush1.msra.mxu0 0.0
    %1406 = vmatprep.subr.mxu0 0.0
    %1407 = vmatpush1.msra.mxu0 0.0
    %1408 = vmatprep.subr.mxu0 0.0
    %1409 = vmatpush1.msra.mxu0 0.0
    %1410 = vmatprep.subr.mxu0 0.0
    %1411 = vmatpush1.msra.mxu0 0.0
    %1412 = vmatprep.subr.mxu0 0.0
    %1413 = vmatpush1.msra.mxu0 0.0
    %1414 = vmatprep.subr.mxu0 0.0
    %1415 = vmatpush1.msra.mxu0 0.0
    %1416 = vmatprep.subr.mxu0 0.0
    %1417 = vmatpush1.msra.mxu0 0.0
    %1418 = vmatprep.subr.mxu0 0.0
    %1419 = vmatpush1.msra.mxu0 0.0
    %1420 = vmatprep.subr.mxu0 0.0
    %1421 = vmatpush1.msra.mxu0 0.0
    %1422 = vmatprep.subr.mxu0 0.0
    %1423 = vmatpush1.msra.mxu0 0.0
    %1424 = vmatprep.subr.mxu0 0.0
    %1425 = vmatpush1.msra.mxu0 0.0
    %1426 = vmatprep.subr.mxu0 0.0
    %1427 = vmatpush1.msra.mxu0 0.0
    %1428 = vmatprep.subr.mxu0 0.0
    %1429 = vmatpush1.msra.mxu0 0.0
    %1430 = vmatprep.subr.mxu0 0.0
    %1431 = vmatpush1.msra.mxu0 0.0
    %1432 = vmatprep.subr.mxu0 0.0
    %1433 = vmatpush1.msra.mxu0 0.0
    %1434 = vmatprep.subr.mxu0 0.0
    %1435 = vmatpush1.msra.mxu0 0.0
    %1436 = vmatprep.subr.mxu0 0.0
    %1437 = vmatpush1.msra.mxu0 0.0
    %1438 = vmatprep.subr.mxu0 0.0
    %1439 = vmatpush1.msra.mxu0 0.0
    %1440 = vmatprep.mubr.f32.mxu0 0.0
    %1441 = vmatmul.mubr.f32.gmra.mrb[0].mxu0 %v1371
    %v1442 = vpop.f32.mrb[0].mxu0
    %v1443 = vadd.f32 0.0, %v1442
    %v1444 = vpop.f32.mrb[0].mxu0
    %1445 = vmatprep.mubr.f32.mxu0 0.0
    %1446 = vmatmul.mubr.f32.gmra.mrb[0].mxu0 %v1374
    %v1447 = vpop.f32.mrb[0].mxu0
    %v1448 = vadd.f32 0.0, %v1447
    %v1449 = vpop.f32.mrb[0].mxu0
    %1450 = vdwg.mxu0
    %v1451 = vsel %vm85, %v1200, 0.0
    %v1452 = vsel %vm85, %v1281, 0.0
    %v1453 = vadd.f32 %v1451, %v1452
    %v1454 = vsel %vm85, %v1362, 0.0
    %v1455 = vadd.f32 %v1453, %v1454
    %v1456 = vsel %vm85, %v1443, 0.0
    %v1457 = vadd.f32 %v1455, %v1456
    %v1458 = vsel %vm85, %v1205, 0.0
    %v1459 = vsel %vm85, %v1286, 0.0
    %v1460 = vadd.f32 %v1458, %v1459
    %v1461 = vsel %vm85, %v1367, 0.0
    %v1462 = vadd.f32 %v1460, %v1461
    %v1463 = vsel %vm85, %v1448, 0.0
    %v1464 = vadd.f32 %v1462, %v1463
    %v1465 = vld [vmem:[%s6] sm:$0x1]
    %v1467 = vlaneseq
    %v1468 = vshrl.u32 %v1467, 7
    %v1469 = vsub.s32 0, %v1468
    %v1470 = vrot.slane %v1465, %v1469
    %v1472 = vadd.f32 %v1457, %v1470
    %v1473 = vadd.f32 %v1464, %v1470
    %v1474 = vadd.f32 %v79, %v1472
    %v1475 = vadd.f32 %v80, %v1473
    %v1476 = vsel %vm85, %v1474, 0.0
    %1477 = vadd.xlane.f32.xlu0 %v1476
    %v1478 = vpop.xlane.xlu0 %1477
    %v1479 = vsel %vm85, %v1475, 0.0
    %1480 = vadd.xlane.f32.xlu0 %v1479
    %v1481 = vpop.xlane.xlu0 %1480
    %v1482 = vrcp.pop 32.0
    %v1483 = vmul.f32 %v1478, %v1482
    %v1484 = vmul.f32 %v1481, %v1482
    %v1485 = vsub.f32 %v1474, %v1483
    %v1486 = vsub.f32 %v1475, %v1484
    %v1487 = vmul.f32 %v1485, %v1485
    %v1488 = vmul.f32 %v1486, %v1486
    %v1489 = vsel %vm85, %v1487, 0.0
    %1490 = vadd.xlane.f32.xlu0 %v1489
    %v1491 = vpop.xlane.xlu0 %1490
    %v1492 = vsel %vm85, %v1488, 0.0
    %1493 = vadd.xlane.f32.xlu0 %v1492
    %v1494 = vpop.xlane.xlu0 %1493
    %v1495 = vmul.f32 %v1491, %v1482
    %v1496 = vmul.f32 %v1494, %v1482
    %v1497 = vadd.f32 %v1495, 1e-05
    %v1498 = vadd.f32 %v1496, 1e-05
    %v1499 = vrsqrt.pop %v1497
    %v1500 = vrsqrt.pop %v1498
    %v1501 = vmul.f32 %v1485, %v1499
    %v1502 = vmul.f32 %v1486, %v1500
    %v1503 = vld [vmem:[%s11] sm:$0x1]
    %v1505 = vlaneseq
    %v1506 = vshrl.u32 %v1505, 7
    %v1507 = vsub.s32 0, %v1506
    %v1508 = vrot.slane %v1503, %v1507
    %v1510 = vmul.f32 %v1501, %v1508
    %v1511 = vmul.f32 %v1502, %v1508
    %v1512 = vld [vmem:[%s12] sm:$0x1]
    %v1514 = vlaneseq
    %v1515 = vshrl.u32 %v1514, 7
    %v1516 = vsub.s32 0, %v1515
    %v1517 = vrot.slane %v1512, %v1516
    %v1519 = vadd.f32 %v1510, %v1517
    %v1520 = vadd.f32 %v1511, %v1517
    %v1521 = vld [vmem:[%s7] sm:$0xff]
    %v1522 = vld [vmem:[%s7 + $0x8] sm:$0xff]
    %v1523 = vld [vmem:[%s7 + $0x10] sm:$0xff]
    %v1524 = vld [vmem:[%s7 + $0x18] sm:$0xff]
    %v1525 = vld [vmem:[%s8] sm:$0x1]
    %v1527 = vlaneseq
    %v1528 = vshrl.u32 %v1527, 7
    %v1529 = vsub.s32 0, %v1528
    %v1530 = vrot.slane %v1525, %v1529
    %v1533 = vsel %vm85, %v1519, 0
    %v1536 = vsel %vm85, %v1520, 0
    %1538 = vmatprep.subr.mxu0 0.0
    %1539 = vmatpush1.msra.mxu0 %v1521
    %1540 = vmatprep.subr.mxu0 0.0
    %1541 = vmatpush1.msra.mxu0 %v1522
    %1542 = vmatprep.subr.mxu0 0.0
    %1543 = vmatpush1.msra.mxu0 %v1523
    %1544 = vmatprep.subr.mxu0 0.0
    %1545 = vmatpush1.msra.mxu0 %v1524
    %1546 = vmatprep.subr.mxu0 0.0
    %1547 = vmatpush1.msra.mxu0 0.0
    %1548 = vmatprep.subr.mxu0 0.0
    %1549 = vmatpush1.msra.mxu0 0.0
    %1550 = vmatprep.subr.mxu0 0.0
    %1551 = vmatpush1.msra.mxu0 0.0
    %1552 = vmatprep.subr.mxu0 0.0
    %1553 = vmatpush1.msra.mxu0 0.0
    %1554 = vmatprep.subr.mxu0 0.0
    %1555 = vmatpush1.msra.mxu0 0.0
    %1556 = vmatprep.subr.mxu0 0.0
    %1557 = vmatpush1.msra.mxu0 0.0
    %1558 = vmatprep.subr.mxu0 0.0
    %1559 = vmatpush1.msra.mxu0 0.0
    %1560 = vmatprep.subr.mxu0 0.0
    %1561 = vmatpush1.msra.mxu0 0.0
    %1562 = vmatprep.subr.mxu0 0.0
    %1563 = vmatpush1.msra.mxu0 0.0
    %1564 = vmatprep.subr.mxu0 0.0
    %1565 = vmatpush1.msra.mxu0 0.0
    %1566 = vmatprep.subr.mxu0 0.0
    %1567 = vmatpush1.msra.mxu0 0.0
    %1568 = vmatprep.subr.mxu0 0.0
    %1569 = vmatpush1.msra.mxu0 0.0
    %1570 = vmatprep.subr.mxu0 0.0
    %1571 = vmatpush1.msra.mxu0 0.0
    %1572 = vmatprep.subr.mxu0 0.0
    %1573 = vmatpush1.msra.mxu0 0.0
    %1574 = vmatprep.subr.mxu0 0.0
    %1575 = vmatpush1.msra.mxu0 0.0
    %1576 = vmatprep.subr.mxu0 0.0
    %1577 = vmatpush1.msra.mxu0 0.0
    %1578 = vmatprep.subr.mxu0 0.0
    %1579 = vmatpush1.msra.mxu0 0.0
    %1580 = vmatprep.subr.mxu0 0.0
    %1581 = vmatpush1.msra.mxu0 0.0
    %1582 = vmatprep.subr.mxu0 0.0
    %1583 = vmatpush1.msra.mxu0 0.0
    %1584 = vmatprep.subr.mxu0 0.0
    %1585 = vmatpush1.msra.mxu0 0.0
    %1586 = vmatprep.subr.mxu0 0.0
    %1587 = vmatpush1.msra.mxu0 0.0
    %1588 = vmatprep.subr.mxu0 0.0
    %1589 = vmatpush1.msra.mxu0 0.0
    %1590 = vmatprep.subr.mxu0 0.0
    %1591 = vmatpush1.msra.mxu0 0.0
    %1592 = vmatprep.subr.mxu0 0.0
    %1593 = vmatpush1.msra.mxu0 0.0
    %1594 = vmatprep.subr.mxu0 0.0
    %1595 = vmatpush1.msra.mxu0 0.0
    %1596 = vmatprep.subr.mxu0 0.0
    %1597 = vmatpush1.msra.mxu0 0.0
    %1598 = vmatprep.subr.mxu0 0.0
    %1599 = vmatpush1.msra.mxu0 0.0
    %1600 = vmatprep.subr.mxu0 0.0
    %1601 = vmatpush1.msra.mxu0 0.0
    %1602 = vmatprep.mubr.f32.mxu0 0.0
    %1603 = vmatmul.mubr.f32.gmra.mrb[0].mxu0 %v1533
    %v1604 = vpop.f32.mrb[0].mxu0
    %v1605 = vadd.f32 %v1530, %v1604
    %v1606 = vpop.f32.mrb[0].mxu0
    %1607 = vmatprep.mubr.f32.mxu0 0.0
    %1608 = vmatmul.mubr.f32.gmra.mrb[0].mxu0 %v1536
    %v1609 = vpop.f32.mrb[0].mxu0
    %v1610 = vadd.f32 %v1530, %v1609
    %v1611 = vpop.f32.mrb[0].mxu0
    %1612 = vdwg.mxu0
    %v1613 = vmax.f32 %v1605, 0.0
    %v1614 = vmax.f32 %v1610, 0.0
    %v1615 = vld [vmem:[%s9] sm:$0xff]
    %v1616 = vld [vmem:[%s9 + $0x8] sm:$0xff]
    %v1617 = vld [vmem:[%s9 + $0x10] sm:$0xff]
    %v1618 = vld [vmem:[%s9 + $0x18] sm:$0xff]
    %v1619 = vld [vmem:[%s9 + $0x20] sm:$0xff]
    %v1620 = vld [vmem:[%s9 + $0x28] sm:$0xff]
    %v1621 = vld [vmem:[%s9 + $0x30] sm:$0xff]
    %v1622 = vld [vmem:[%s9 + $0x38] sm:$0xff]
    %v1623 = vld [vmem:[%s9 + $0x40] sm:$0xff]
    %v1624 = vld [vmem:[%s9 + $0x48] sm:$0xff]
    %v1625 = vld [vmem:[%s9 + $0x50] sm:$0xff]
    %v1626 = vld [vmem:[%s9 + $0x58] sm:$0xff]
    %v1627 = vld [vmem:[%s9 + $0x60] sm:$0xff]
    %v1628 = vld [vmem:[%s9 + $0x68] sm:$0xff]
    %v1629 = vld [vmem:[%s9 + $0x70] sm:$0xff]
    %v1630 = vld [vmem:[%s9 + $0x78] sm:$0xff]
    %v1631 = vld [vmem:[%s10] sm:$0x1]
    %v1633 = vlaneseq
    %v1634 = vshrl.u32 %v1633, 7
    %v1635 = vsub.s32 0, %v1634
    %v1636 = vrot.slane %v1631, %v1635
    %1638 = vmatprep.subr.mxu0 0.0
    %1639 = vmatpush1.msra.mxu0 %v1615
    %1640 = vmatprep.subr.mxu0 0.0
    %1641 = vmatpush1.msra.mxu0 %v1616
    %1642 = vmatprep.subr.mxu0 0.0
    %1643 = vmatpush1.msra.mxu0 %v1617
    %1644 = vmatprep.subr.mxu0 0.0
    %1645 = vmatpush1.msra.mxu0 %v1618
    %1646 = vmatprep.subr.mxu0 0.0
    %1647 = vmatpush1.msra.mxu0 %v1619
    %1648 = vmatprep.subr.mxu0 0.0
    %1649 = vmatpush1.msra.mxu0 %v1620
    %1650 = vmatprep.subr.mxu0 0.0
    %1651 = vmatpush1.msra.mxu0 %v1621
    %1652 = vmatprep.subr.mxu0 0.0
    %1653 = vmatpush1.msra.mxu0 %v1622
    %1654 = vmatprep.subr.mxu0 0.0
    %1655 = vmatpush1.msra.mxu0 %v1623
    %1656 = vmatprep.subr.mxu0 0.0
    %1657 = vmatpush1.msra.mxu0 %v1624
    %1658 = vmatprep.subr.mxu0 0.0
    %1659 = vmatpush1.msra.mxu0 %v1625
    %1660 = vmatprep.subr.mxu0 0.0
    %1661 = vmatpush1.msra.mxu0 %v1626
    %1662 = vmatprep.subr.mxu0 0.0
    %1663 = vmatpush1.msra.mxu0 %v1627
    %1664 = vmatprep.subr.mxu0 0.0
    %1665 = vmatpush1.msra.mxu0 %v1628
    %1666 = vmatprep.subr.mxu0 0.0
    %1667 = vmatpush1.msra.mxu0 %v1629
    %1668 = vmatprep.subr.mxu0 0.0
    %1669 = vmatpush1.msra.mxu0 %v1630
    %1670 = vmatprep.subr.mxu0 0.0
    %1671 = vmatpush1.msra.mxu0 0.0
    %1672 = vmatprep.subr.mxu0 0.0
    %1673 = vmatpush1.msra.mxu0 0.0
    %1674 = vmatprep.subr.mxu0 0.0
    %1675 = vmatpush1.msra.mxu0 0.0
    %1676 = vmatprep.subr.mxu0 0.0
    %1677 = vmatpush1.msra.mxu0 0.0
    %1678 = vmatprep.subr.mxu0 0.0
    %1679 = vmatpush1.msra.mxu0 0.0
    %1680 = vmatprep.subr.mxu0 0.0
    %1681 = vmatpush1.msra.mxu0 0.0
    %1682 = vmatprep.subr.mxu0 0.0
    %1683 = vmatpush1.msra.mxu0 0.0
    %1684 = vmatprep.subr.mxu0 0.0
    %1685 = vmatpush1.msra.mxu0 0.0
    %1686 = vmatprep.subr.mxu0 0.0
    %1687 = vmatpush1.msra.mxu0 0.0
    %1688 = vmatprep.subr.mxu0 0.0
    %1689 = vmatpush1.msra.mxu0 0.0
    %1690 = vmatprep.subr.mxu0 0.0
    %1691 = vmatpush1.msra.mxu0 0.0
    %1692 = vmatprep.subr.mxu0 0.0
    %1693 = vmatpush1.msra.mxu0 0.0
    %1694 = vmatprep.subr.mxu0 0.0
    %1695 = vmatpush1.msra.mxu0 0.0
    %1696 = vmatprep.subr.mxu0 0.0
    %1697 = vmatpush1.msra.mxu0 0.0
    %1698 = vmatprep.subr.mxu0 0.0
    %1699 = vmatpush1.msra.mxu0 0.0
    %1700 = vmatprep.subr.mxu0 0.0
    %1701 = vmatpush1.msra.mxu0 0.0
    %1702 = vmatprep.mubr.f32.mxu0 0.0
    %1703 = vmatmul.mubr.f32.gmra.mrb[0].mxu0 %v1613
    %v1704 = vpop.f32.mrb[0].mxu0
    %v1705 = vadd.f32 %v1636, %v1704
    %v1706 = vpop.f32.mrb[0].mxu0
    %1707 = vmatprep.mubr.f32.mxu0 0.0
    %1708 = vmatmul.mubr.f32.gmra.mrb[0].mxu0 %v1614
    %v1709 = vpop.f32.mrb[0].mxu0
    %v1710 = vadd.f32 %v1636, %v1709
    %v1711 = vpop.f32.mrb[0].mxu0
    %1712 = vdwg.mxu0
    %v1713 = vadd.f32 %v1519, %v1705
    %v1714 = vadd.f32 %v1520, %v1710
    %v1715 = vsel %vm85, %v1713, 0.0
    %1716 = vadd.xlane.f32.xlu0 %v1715
    %v1717 = vpop.xlane.xlu0 %1716
    %v1718 = vsel %vm85, %v1714, 0.0
    %1719 = vadd.xlane.f32.xlu0 %v1718
    %v1720 = vpop.xlane.xlu0 %1719
    %v1721 = vmul.f32 %v1717, %v1482
    %v1722 = vmul.f32 %v1720, %v1482
    %v1723 = vsub.f32 %v1713, %v1721
    %v1724 = vsub.f32 %v1714, %v1722
    %v1725 = vmul.f32 %v1723, %v1723
    %v1726 = vmul.f32 %v1724, %v1724
    %v1727 = vsel %vm85, %v1725, 0.0
    %1728 = vadd.xlane.f32.xlu0 %v1727
    %v1729 = vpop.xlane.xlu0 %1728
    %v1730 = vsel %vm85, %v1726, 0.0
    %1731 = vadd.xlane.f32.xlu0 %v1730
    %v1732 = vpop.xlane.xlu0 %1731
    %v1733 = vmul.f32 %v1729, %v1482
    %v1734 = vmul.f32 %v1732, %v1482
    %v1735 = vadd.f32 %v1733, 1e-05
    %v1736 = vadd.f32 %v1734, 1e-05
    %v1737 = vrsqrt.pop %v1735
    %v1738 = vrsqrt.pop %v1736
    %v1739 = vmul.f32 %v1723, %v1737
    %v1740 = vmul.f32 %v1724, %v1738
    %v1741 = vld [vmem:[%s13] sm:$0x1]
    %v1743 = vlaneseq
    %v1744 = vshrl.u32 %v1743, 7
    %v1745 = vsub.s32 0, %v1744
    %v1746 = vrot.slane %v1741, %v1745
    %v1748 = vmul.f32 %v1739, %v1746
    %v1749 = vmul.f32 %v1740, %v1746
    %v1750 = vld [vmem:[%s14] sm:$0x1]
    %v1752 = vlaneseq
    %v1753 = vshrl.u32 %v1752, 7
    %v1754 = vsub.s32 0, %v1753
    %v1755 = vrot.slane %v1750, %v1754
    %v1757 = vadd.f32 %v1748, %v1755
    %v1758 = vadd.f32 %v1749, %v1755
    %1759 = vst.msk [vmem:[#allocation7] sm:$0xff] %vm85, %v1757
    %1760 = vst.msk [vmem:[#allocation7 + $0x8] sm:$0xff] %vm85, %v1758
    // Predicated region
    $region70: #{tpu_custom_call.1} parent=1 // pred_check
      _
    $region71: #{tpu_custom_call.1} parent=1 // pred_check_branch
      %1762 = sbr.rel (0) target = $region73
    $region72: #{tpu_custom_call.1} parent=1 // pred_region
      %s1764 = ssub.s32 256, 256
      %1765 = vsyncadd [#allocation4], %s1764
      %s1766 = sshll.u32 [#allocation7], 4
      %s1767 = int_to_ptr.vmem [resolvable:$true] %s1766
      %1772 = dma.vmem_to_hbm [thread:$0]  %s1767, 256, %s15, [#allocation4], 128, 128, 8
    $region73: #{tpu_custom_call.1} parent=1 // pred_fallthru
      _
    // Predicated region
    $region74: #{tpu_custom_call.1} parent=1 // pred_check
      _
    $region75: #{tpu_custom_call.1} parent=1 // pred_check_branch
      %1774 = sbr.rel (0) target = $region77
    $region76: #{tpu_custom_call.1} parent=1 // pred_region
      %1775 = dma.done [#allocation4], 256
    $region77: #{tpu_custom_call.1} parent=1 // pred_fallthru
      _
    %1776 = vsyncpa [#allocation3], 1
    %1777 = vsyncpa [#allocation6], 1
    %1778 = vsyncpa [#allocation4], 1

</llo_original>
